<compile_context>
chip_gen: v7x
topology: tpu7x:2x2x1
jax: 0.10.0
libtpu: 0.0.40
codegen_flags: <defaults>
</compile_context>

<pallas_src>
import functools

import jax
import jax.numpy as jnp
import numpy as np
from jax.experimental import pallas as pl
from jax.experimental.pallas import tpu as pltpu


# -----------------------------------------------------------------------------
# Helpers
# -----------------------------------------------------------------------------
def _round_up(v, m):
    return ((v + m - 1) // m) * m


def _device_kind():
    try:
        return jax.devices()[0].device_kind.lower()
    except Exception:
        return ""


def _vmem_budget_bytes():
    """~85% of physical VMEM (generation aware)."""
    try:
        phys = int(pltpu.get_tpu_info().vmem_capacity_bytes)
    except Exception:
        # Generation-aware fallback: 64 MiB per TC on v7x, 128 MiB on v5e/v6e.
        phys = (64 if "v7" in _device_kind() else 128) * 1024 * 1024
    return int(phys * 0.85)


def _fused_vmem_need(N_p, F_in_p, F_out_p, Kp1, a_buffers):
    """VMEM estimate for the whole-A kernels (a_buffers = 2 pipelined, 1 resident)."""
    b2, b4 = 2, 4
    need = (a_buffers * N_p * N_p * b2              # A (bf16)
            + 2 * N_p * F_in_p * b2                 # x block (double-buffered bf16)
            + 2 * Kp1 * F_in_p * F_out_p * b2       # W (bf16)
            + 2 * F_out_p * b4                      # bias
            + 2 * N_p * F_out_p * b4                # out block (f32)
            + Kp1 * N_p * F_in_p * b2               # T slab scratch (bf16)
            + 3 * N_p * F_in_p * b4                 # live f32 T_{k-1}/T_{k-2}/T_k
            + N_p * F_out_p * b4)                   # projection temp
    return int(need * 1.15) + (2 << 20)


# -----------------------------------------------------------------------------
# Shared Chebyshev-recursion + wide-projection body (whole-A kernels)
# -----------------------------------------------------------------------------
def _cheb_project_body(x, A, w_ref, b_ref, o_ref, slab_ref, *, K, F_in_p):
    """x: (N_p, F_in_p) bf16 array | A: (N_p, N_p) bf16 array
    w_ref: ((K+1)*F_in_p, F_out_p) bf16 | b_ref: (1, F_out_p) f32
    o_ref: (N_p, F_out_p) f32 | slab_ref: (N_p, (K+1)*F_in_p) bf16 scratch."""
    # T0 = x
    slab_ref[:, 0:F_in_p] = x

    if K >= 1:
        # bf16 operands on the MXU; f32 accumulation / Chebyshev combine.
        t1 = jnp.dot(A, x, preferred_element_type=jnp.float32)
        slab_ref[:, F_in_p:2 * F_in_p] = t1.astype(jnp.bfloat16)
        t_prev = x.astype(jnp.float32)
        t_cur = t1
        for k in range(2, K + 1):
            t_next = (2.0 * jnp.dot(A, t_cur.astype(jnp.bfloat16),
                                    preferred_element_type=jnp.float32)
                      - t_prev)
            slab_ref[:, k * F_in_p:(k + 1) * F_in_p] = t_next.astype(jnp.bfloat16)
            t_prev, t_cur = t_cur, t_next

    # One wide, lane-dense bf16 matmul:
    #   [N_p, (K+1)*F_in_p] @ [(K+1)*F_in_p, F_out_p]  (f32 accumulate)
    out = jnp.dot(slab_ref[...], w_ref[...], preferred_element_type=jnp.float32)
    o_ref[...] = (out + b_ref[...]).astype(o_ref.dtype)


# -----------------------------------------------------------------------------
# Kernel A: whole-A-per-batch, pipelined A block (grid = (B,))
# -----------------------------------------------------------------------------
def _mswavelet_fused_kernel(x_ref, a_ref, w_ref, b_ref, o_ref, slab_ref, *,
                            K, F_in_p):
    _cheb_project_body(x_ref[...], a_ref[...], w_ref, b_ref, o_ref, slab_ref,
                       K=K, F_in_p=F_in_p)


# -----------------------------------------------------------------------------
# Kernel A': whole-A-per-batch, A single-buffered via manual DMA (grid = (B,))
# (used when double-buffered A does not fit VMEM, e.g. v7x 64 MiB)
# -----------------------------------------------------------------------------
def _mswavelet_resident_kernel(x_ref, a_hbm_ref, w_ref, b_ref, o_ref,
                               a_vmem, slab_ref, *, K, F_in_p):
    b = pl.program_id(0)
    pltpu.sync_copy(a_hbm_ref.at[b], a_vmem)      # single VMEM copy of A[b]
    _cheb_project_body(x_ref[...], a_vmem[...], w_ref, b_ref, o_ref, slab_ref,
                       K=K, F_in_p=F_in_p)


# -----------------------------------------------------------------------------
# Kernel B: A streamed in row tiles, projection fused into the recursion
# (grid = (B, K, R)); output block resident per batch, accumulated in f32.
# -----------------------------------------------------------------------------
def _mswavelet_rowstream_kernel(x_ref, a_ref, w_ref, b_ref, o_ref, buf_ref, *,
                                K, TR, F_in_p):
    """x_ref: (N_p, F_in_p) bf16 (full, resident per batch)
    a_ref: (TR, N_p) bf16 (row tile) | w_ref: ((K+1)*F_in_p, F_out_p) bf16
    b_ref: (1, F_out_p) f32 | o_ref: (N_p, F_out_p) f32 (resident accumulator)
    buf_ref: (2, N_p, F_in_p) bf16 ping-pong holding T_{k-1} / T_{k-2}."""
    kk = pl.program_id(1) + 1                 # Chebyshev order being produced
    r = pl.program_id(2)
    row0 = pl.multiple_of(r * TR, TR)
    rows = pl.ds(row0, TR)

    a_rows = a_ref[...]                       # (TR, N_p) bf16

    def w_k(k):
        start = k * F_in_p
        if not isinstance(k, int):
            start = pl.multiple_of(start, F_in_p)
        return w_ref[pl.ds(start, F_in_p), :]

    # ---- kk == 1 : init buf with T0/T1, project both, fold in the bias ------
    @pl.when(kk == 1)
    def _():
        t0_rows = x_ref[rows, :]                               # bf16
        buf_ref[0, rows, :] = t0_rows
        t1_rows = jnp.dot(a_rows, x_ref[...],
                          preferred_element_type=jnp.float32)
        t1_bf = t1_rows.astype(jnp.bfloat16)
        buf_ref[1, rows, :] = t1_bf
        o_ref[rows, :] = (
            b_ref[...]
            + jnp.dot(t0_rows, w_k(0), preferred_element_type=jnp.float32)
            + jnp.dot(t1_bf, w_k(1), preferred_element_type=jnp.float32))

    # ---- kk >= 2 : T_kk = 2 * A @ T_{kk-1} - T_{kk-2}, acc += T_kk @ W_kk ----
    @pl.when(kk >= 2)
    def _():
        def step(cur_slot, prev_slot):
            t_prev_full = buf_ref[prev_slot]                   # (N_p, F_in_p) bf16
            t_km2_rows = buf_ref[cur_slot, rows, :].astype(jnp.float32)
            t_new = (2.0 * jnp.dot(a_rows, t_prev_full,
                                   preferred_element_type=jnp.float32)
                     - t_km2_rows)
            t_new_bf = t_new.astype(jnp.bfloat16)
            buf_ref[cur_slot, rows, :] = t_new_bf
            o_ref[rows, :] = o_ref[rows, :] + jnp.dot(
                t_new_bf, w_k(kk), preferred_element_type=jnp.float32)

        @pl.when(kk % 2 == 0)
        def _():
            step(0, 1)

        @pl.when(kk % 2 == 1)
        def _():
            step(1, 0)


# -----------------------------------------------------------------------------
# Wrapper
# -----------------------------------------------------------------------------
def multi_scale_graph_wavelet_conv(x, A_dense, W_scale, bias, *, K, num_scales,
                                   force_path="auto"):
    """x: [B,N,F_in] f32
    A_dense: [B,Na,Na] (either [B,N,N] any float, or already [B,N_p,N_p] bf16)
    W_scale: [S,K+1,F_in,F_out/S] f32   bias: [F_out] f32  ->  [B,N,F_out] f32"""
    B, N, F_in = x.shape
    S, Kp1, _, fo_s = W_scale.shape
    F_out = S * fo_s
    assert S == num_scales and Kp1 == K + 1

    # ---- pad to lane/sublane friendly sizes (zeros are exact no-ops) --------
    N_p = _round_up(max(N, 8), 128)
    F_in_p = _round_up(F_in, 128)
    F_out_p = _round_up(F_out, 128)

    x_p = jnp.zeros((B, N_p, F_in_p), jnp.bfloat16)
    x_p = x_p.at[:, :N, :F_in].set(x.astype(jnp.bfloat16))

    if (A_dense.shape[1] == N_p and A_dense.shape[2] == N_p
            and A_dense.dtype == jnp.bfloat16):
        A_p = A_dense                                # already padded bf16 (one pass)
    else:
        Na = A_dense.shape[1]
        A_p = jnp.zeros((B, N_p, N_p), jnp.bfloat16)
        A_p = A_p.at[:, :Na, :Na].set(A_dense.astype(jnp.bfloat16))

    # Fold scales into output columns: W_k[k, f, s*fo_s + o] = W_scale[s, k, f, o]
    W_k = jnp.transpose(W_scale, (1, 2, 0, 3)).reshape(Kp1, F_in, F_out)
    W_kp = jnp.zeros((Kp1, F_in_p, F_out_p), jnp.float32)
    W_kp = W_kp.at[:, :F_in, :F_out].set(W_k.astype(jnp.float32))
    W_flat = W_kp.reshape(Kp1 * F_in_p, F_out_p).astype(jnp.bfloat16)

    bias_p = jnp.zeros((1, F_out_p), jnp.float32)
    bias_p = bias_p.at[0, :F_out].set(bias.astype(jnp.float32))

    # ---- VMEM budget + path selection ---------------------------------------
    budget = _vmem_budget_bytes()
    need_dbl = _fused_vmem_need(N_p, F_in_p, F_out_p, Kp1, a_buffers=2)
    need_single = _fused_vmem_need(N_p, F_in_p, F_out_p, Kp1, a_buffers=1)

    if force_path != "auto":
        path = force_path
    elif K == 0 or need_dbl <= budget:
        path = "fused"
    elif need_single <= budget:
        path = "resident"
    else:
        path = "rowstream"
    if path == "rowstream" and K == 0:
        path = "fused"

    out_shape = jax.ShapeDtypeStruct((B, N_p, F_out_p), jnp.float32)

    if path == "fused":
        grid_spec = pltpu.PrefetchScalarGridSpec(
            num_scalar_prefetch=0,
            grid=(B,),
            in_specs=[
                pl.BlockSpec((pl.Squeezed(), N_p, F_in_p), lambda b: (b, 0, 0)),
                pl.BlockSpec((pl.Squeezed(), N_p, N_p), lambda b: (b, 0, 0)),
                pl.BlockSpec((Kp1 * F_in_p, F_out_p), lambda b: (0, 0)),
                pl.BlockSpec((1, F_out_p), lambda b: (0, 0)),
            ],
            out_specs=pl.BlockSpec((pl.Squeezed(), N_p, F_out_p),
                                   lambda b: (b, 0, 0)),
            scratch_shapes=[pltpu.VMEM((N_p, Kp1 * F_in_p), jnp.bfloat16)],
        )
        out_p = pl.pallas_call(
            functools.partial(_mswavelet_fused_kernel, K=K, F_in_p=F_in_p),
            out_shape=out_shape,
            grid_spec=grid_spec,
            compiler_params=pltpu.CompilerParams(
                dimension_semantics=("parallel",),
                vmem_limit_bytes=budget),
        )(x_p, A_p, W_flat, bias_p)

    elif path == "resident":
        # A stays in HBM (pl.ANY); one VMEM copy per batch via sync_copy.
        grid_spec = pltpu.PrefetchScalarGridSpec(
            num_scalar_prefetch=0,
            grid=(B,),
            in_specs=[
                pl.BlockSpec((pl.Squeezed(), N_p, F_in_p), lambda b: (b, 0, 0)),
                pl.BlockSpec(memory_space=pl.ANY),
                pl.BlockSpec((Kp1 * F_in_p, F_out_p), lambda b: (0, 0)),
                pl.BlockSpec((1, F_out_p), lambda b: (0, 0)),
            ],
            out_specs=pl.BlockSpec((pl.Squeezed(), N_p, F_out_p),
                                   lambda b: (b, 0, 0)),
            scratch_shapes=[pltpu.VMEM((N_p, N_p), jnp.bfloat16),
                            pltpu.VMEM((N_p, Kp1 * F_in_p), jnp.bfloat16)],
        )
        out_p = pl.pallas_call(
            functools.partial(_mswavelet_resident_kernel, K=K, F_in_p=F_in_p),
            out_shape=out_shape,
            grid_spec=grid_spec,
            compiler_params=pltpu.CompilerParams(
                dimension_semantics=("parallel",),
                vmem_limit_bytes=budget),
        )(x_p, A_p, W_flat, bias_p)

    else:  # rowstream
        # Generation-aware row tile: v5e MXU is 128x128 -> TR=128.
        kind = _device_kind()
        if "v5" in kind:
            TR = 128
        else:
            TR = 256 if N_p % 256 == 0 else 128
        R = N_p // TR
        grid_spec = pltpu.PrefetchScalarGridSpec(
            num_scalar_prefetch=0,
            grid=(B, K, R),
            in_specs=[
                pl.BlockSpec((pl.Squeezed(), N_p, F_in_p),
                             lambda b, k, r: (b, 0, 0)),
                pl.BlockSpec((pl.Squeezed(), TR, N_p),
                             lambda b, k, r: (b, r, 0)),
                pl.BlockSpec((Kp1 * F_in_p, F_out_p),
                             lambda b, k, r: (0, 0)),
                pl.BlockSpec((1, F_out_p), lambda b, k, r: (0, 0)),
            ],
            out_specs=pl.BlockSpec((pl.Squeezed(), N_p, F_out_p),
                                   lambda b, k, r: (b, 0, 0)),
            scratch_shapes=[pltpu.VMEM((2, N_p, F_in_p), jnp.bfloat16)],
        )
        out_p = pl.pallas_call(
            functools.partial(_mswavelet_rowstream_kernel, K=K, TR=TR,
                              F_in_p=F_in_p),
            out_shape=out_shape,
            grid_spec=grid_spec,
            compiler_params=pltpu.CompilerParams(
                dimension_semantics=("parallel", "arbitrary", "arbitrary"),
                vmem_limit_bytes=budget),
        )(x_p, A_p, W_flat, bias_p)

    return out_p[:, :N, :F_out]


# -----------------------------------------------------------------------------
# Glue: parameters + dense graph construction
# -----------------------------------------------------------------------------
def make_params(key, F_in, F_out, scales, K):
    """Deterministic Xavier-style init, mirroring AdaptiveGraphWaveletConv."""
    S = len(scales)
    fo_s = F_out // S
    gain = float(np.sqrt(2.0))                  # calculate_gain('relu')
    fan_in = F_in * fo_s
    fan_out = (K + 1) * fo_s
    bound0 = gain * np.sqrt(6.0 / (fan_in + fan_out))
    bound1 = gain * 0.1 * np.sqrt(6.0 / (fan_in + fan_out))

    Ws = []
    for i, scale in enumerate(scales):
        k0, k1 = jax.random.split(jax.random.fold_in(key, i))
        theta0 = jax.random.uniform(k0, (K + 1, F_in, fo_s), jnp.float32,
                                    minval=-bound0, maxval=bound0)
        theta1 = jax.random.uniform(k1, (K + 1, F_in, fo_s), jnp.float32,
                                    minval=-bound1, maxval=bound1)
        # s_local == scale for all nodes -> Theta_local folds to a single
        # node-independent weight: Theta0 + scale * Theta1
        Ws.append(theta0 + scale * theta1)
    W = jnp.stack(Ws, axis=0)                       # [S, K+1, F_in, fo_s]
    bias = jnp.zeros((F_out,), jnp.float32)         # nn.init.zeros_
    return W, bias


def edges_to_dense_padded(edge_index, edge_attr, B, N, N_p):
    """Block-diagonal batched edge_index [2,E] -> A [B,N_p,N_p] bf16 (padded),
    A[b, dst, src] = sum of edge weights (sparse_message_passing == A @ x).
    Built directly padded and cast once (one HBM pass)."""
    # NOTE: assumes strictly block-diagonal batched edges (src//N == dst//N).
    src = edge_index[0]
    dst = edge_index[1]
    b_id = src // N
    src_l = src % N
    dst_l = dst % N
    A = jnp.zeros((B, N_p, N_p), jnp.float32)       # f32 scatter-add (exact sums)
    A = A.at[b_id, dst_l, src_l].add(edge_attr)
    return A.astype(jnp.bfloat16)                   # single cast


# -----------------------------------------------------------------------------
# Reference (mirrors the module math with the kernel's bf16 MXU-operand casts)
# -----------------------------------------------------------------------------
def reference_forward(x, A, W_scale, bias, K):
    hp = jax.lax.Precision.HIGHEST
    bf = lambda v: v.astype(jnp.bfloat16).astype(jnp.float32)
    B = x.shape[0]
    S = W_scale.shape[0]
    Wb = bf(W_scale)
    outs = []
    for b in range(B):
        Ab, x0 = bf(A[b]), bf(x[b])
        T = [x0]
        if K >= 1:
            t1 = jnp.dot(Ab, x0, precision=hp)
            T.append(t1)
            tp, tc = x0, t1
            for _ in range(2, K + 1):
                tn = 2.0 * jnp.dot(Ab, bf(tc), precision=hp) - tp
                T.append(tn)
                tp, tc = tc, tn
        Ts = bf(jnp.stack(T, axis=0))                # [K+1, N, F_in]
        per_scale = [jnp.einsum('knf,kfo->no', Ts, Wb[s], precision=hp)
                     for s in range(S)]
        outs.append(jnp.concatenate(per_scale, axis=-1))
    return jnp.stack(outs, axis=0) + bias


# -----------------------------------------------------------------------------
# Main
# -----------------------------------------------------------------------------
if __name__ == "__main__":
    B, N, F_in, F_out, K = 2, 16, 8, 16, 3
    scales = [0.1, 0.5, 1.0, 2.0]
    E_per_b = 48

    key = jax.random.PRNGKey(0)
    kx, ke_src, ke_dst, kw, kp = jax.random.split(key, 5)

    x = jax.random.normal(kx, (B, N, F_in), jnp.float32)

    # Batched (block-diagonal) edge_index [2, B*E_per_b] and edge_attr.
    src_list, dst_list = [], []
    for b in range(B):
        ks = jax.random.fold_in(ke_src, b)
        kd = jax.random.fold_in(ke_dst, b)
        src_list.append(jax.random.randint(ks, (E_per_b,), 0, N) + b * N)
        dst_list.append(jax.random.randint(kd, (E_per_b,), 0, N) + b * N)
    edge_index = jnp.stack([jnp.concatenate(src_list),
                            jnp.concatenate(dst_list)], axis=0)
    edge_attr = jax.random.uniform(kw, (B * E_per_b,), jnp.float32,
                                   minval=0.0, maxval=1.0)

    N_p = _round_up(max(N, 8), 128)
    A_p = edges_to_dense_padded(edge_index, edge_attr, B, N, N_p)   # padded bf16
    W, bias = make_params(kp, F_in, F_out, scales, K)

    # Path A (auto -> whole-A pipelined), path A' (resident single-buffered A),
    # path B (row-streamed A) — force the non-default ones to exercise them.
    out_auto = multi_scale_graph_wavelet_conv(
        x, A_p, W, bias, K=K, num_scales=len(scales))
    out_res = multi_scale_graph_wavelet_conv(
        x, A_p, W, bias, K=K, num_scales=len(scales), force_path="resident")
    out_row = multi_scale_graph_wavelet_conv(
        x, A_p, W, bias, K=K, num_scales=len(scales), force_path="rowstream")
    out_auto, out_res, out_row = jax.block_until_ready(
        (out_auto, out_res, out_row))

    A_ref = A_p[:, :N, :N].astype(jnp.float32)
    ref = jax.block_until_ready(reference_forward(x, A_ref, W, bias, K))
    for out in (out_auto, out_res, out_row):
        np.testing.assert_allclose(np.asarray(out), np.asarray(ref),
                                   rtol=2e-2, atol=2e-2)

    print("KERNEL_OK")
</pallas_src>

<mosaic_0001>
module attributes {stable_mosaic.version = 11 : i64} {
  func.func @_mswavelet_fused_kernel(%arg0: i32, %arg1: memref<1x128x128xbf16, #tpu.memory_space<vmem>>, %arg2: memref<1x128x128xbf16, #tpu.memory_space<vmem>>, %arg3: memref<512x128xbf16, #tpu.memory_space<vmem>>, %arg4: memref<1x128xf32, #tpu.memory_space<vmem>>, %arg5: memref<1x128x128xf32, #tpu.memory_space<vmem>>, %arg6: memref<128x512xbf16, #tpu.memory_space<vmem>>) attributes {dimension_semantics = [#tpu.dimension_semantics<parallel>], iteration_bounds = array<i64: 2>, scalar_prefetch = 0 : i64, scratch_operands = 1 : i64, tpu.core_type = #tpu.core_type<tc>, window_params = [{transform_indices = @transform_0, window_bounds = array<i64: 1, 128, 128>}, {transform_indices = @transform_1, window_bounds = array<i64: 1, 128, 128>}, {pipeline_mode = #tpu.pipeline_mode<synchronous>, transform_indices = @transform_2, window_bounds = array<i64: 512, 128>}, {pipeline_mode = #tpu.pipeline_mode<synchronous>, transform_indices = @transform_3, window_bounds = array<i64: 1, 128>}, {transform_indices = @transform_4, window_bounds = array<i64: 1, 128, 128>}]} {
    %c0 = arith.constant 0 : index
    %c0_0 = arith.constant 0 : index
    %c0_1 = arith.constant 0 : index
    %0 = vector.load %arg1[%c0, %c0_0, %c0_1] : memref<1x128x128xbf16, #tpu.memory_space<vmem>>, vector<1x128x128xbf16>
    %1 = vector.shape_cast %0 : vector<1x128x128xbf16> to vector<128x128xbf16>
    %c0_2 = arith.constant 0 : index
    %c0_3 = arith.constant 0 : index
    %c0_4 = arith.constant 0 : index
    %2 = vector.load %arg2[%c0_2, %c0_3, %c0_4] : memref<1x128x128xbf16, #tpu.memory_space<vmem>>, vector<1x128x128xbf16>
    %3 = vector.shape_cast %2 : vector<1x128x128xbf16> to vector<128x128xbf16>
    %c0_5 = arith.constant 0 : index
    %c0_6 = arith.constant 0 : index
    %4 = vector.load %arg6[%c0_5, %c0_6] : memref<128x512xbf16, #tpu.memory_space<vmem>>, vector<128x128xbf16>
    tpu.vector_store %arg6[%c0_5, %c0_6], %1 {strides = array<i32>} : memref<128x512xbf16, #tpu.memory_space<vmem>>, vector<128x128xbf16>,
    %cst = arith.constant dense<0.000000e+00> : vector<128x128xf32>
    %5 = tpu.matmul %3, %1, %cst {dimension_numbers = #tpu.dot_dimension_numbers<[1], [0], [0], [1], [0, 0, 1, 1], [], []>} : vector<128x128xbf16>, vector<128x128xbf16>, vector<128x128xf32> -> vector<128x128xf32>
    %6 = arith.truncf %5 : vector<128x128xf32> to vector<128x128xbf16>
    %c0_7 = arith.constant 0 : index
    %c128 = arith.constant 128 : index
    %7 = vector.load %arg6[%c0_7, %c128] : memref<128x512xbf16, #tpu.memory_space<vmem>>, vector<128x128xbf16>
    tpu.vector_store %arg6[%c0_7, %c128], %6 {strides = array<i32>} : memref<128x512xbf16, #tpu.memory_space<vmem>>, vector<128x128xbf16>,
    %8 = arith.extf %1 : vector<128x128xbf16> to vector<128x128xf32>
    %9 = arith.truncf %5 : vector<128x128xf32> to vector<128x128xbf16>
    %cst_8 = arith.constant dense<0.000000e+00> : vector<128x128xf32>
    %10 = tpu.matmul %3, %9, %cst_8 {dimension_numbers = #tpu.dot_dimension_numbers<[1], [0], [0], [1], [0, 0, 1, 1], [], []>} : vector<128x128xbf16>, vector<128x128xbf16>, vector<128x128xf32> -> vector<128x128xf32>
    %cst_9 = arith.constant 2.000000e+00 : f32
    %11 = vector.broadcast %cst_9 : f32 to vector<128x128xf32>
    %12 = arith.mulf %11, %10 : vector<128x128xf32>
    %13 = arith.subf %12, %8 : vector<128x128xf32>
    %14 = arith.truncf %13 : vector<128x128xf32> to vector<128x128xbf16>
    %c0_10 = arith.constant 0 : index
    %c256 = arith.constant 256 : index
    %15 = vector.load %arg6[%c0_10, %c256] : memref<128x512xbf16, #tpu.memory_space<vmem>>, vector<128x128xbf16>
    tpu.vector_store %arg6[%c0_10, %c256], %14 {strides = array<i32>} : memref<128x512xbf16, #tpu.memory_space<vmem>>, vector<128x128xbf16>,
    %16 = arith.truncf %13 : vector<128x128xf32> to vector<128x128xbf16>
    %cst_11 = arith.constant dense<0.000000e+00> : vector<128x128xf32>
    %17 = tpu.matmul %3, %16, %cst_11 {dimension_numbers = #tpu.dot_dimension_numbers<[1], [0], [0], [1], [0, 0, 1, 1], [], []>} : vector<128x128xbf16>, vector<128x128xbf16>, vector<128x128xf32> -> vector<128x128xf32>
    %cst_12 = arith.constant 2.000000e+00 : f32
    %18 = vector.broadcast %cst_12 : f32 to vector<128x128xf32>
    %19 = arith.mulf %18, %17 : vector<128x128xf32>
    %20 = arith.subf %19, %5 : vector<128x128xf32>
    %21 = arith.truncf %20 : vector<128x128xf32> to vector<128x128xbf16>
    %c0_13 = arith.constant 0 : index
    %c384 = arith.constant 384 : index
    %22 = vector.load %arg6[%c0_13, %c384] : memref<128x512xbf16, #tpu.memory_space<vmem>>, vector<128x128xbf16>
    tpu.vector_store %arg6[%c0_13, %c384], %21 {strides = array<i32>} : memref<128x512xbf16, #tpu.memory_space<vmem>>, vector<128x128xbf16>,
    %c0_14 = arith.constant 0 : index
    %c0_15 = arith.constant 0 : index
    %23 = vector.load %arg6[%c0_14, %c0_15] : memref<128x512xbf16, #tpu.memory_space<vmem>>, vector<128x512xbf16>
    %c0_16 = arith.constant 0 : index
    %c0_17 = arith.constant 0 : index
    %24 = vector.load %arg3[%c0_16, %c0_17] : memref<512x128xbf16, #tpu.memory_space<vmem>>, vector<512x128xbf16>
    %cst_18 = arith.constant dense<0.000000e+00> : vector<128x128xf32>
    %25 = tpu.matmul %23, %24, %cst_18 {dimension_numbers = #tpu.dot_dimension_numbers<[1], [0], [0], [1], [0, 0, 1, 1], [], []>} : vector<128x512xbf16>, vector<512x128xbf16>, vector<128x128xf32> -> vector<128x128xf32>
    %c0_19 = arith.constant 0 : index
    %c0_20 = arith.constant 0 : index
    %26 = vector.load %arg4[%c0_19, %c0_20] : memref<1x128xf32, #tpu.memory_space<vmem>>, vector<1x128xf32>
    %27 = vector.broadcast %26 : vector<1x128xf32> to vector<128x128xf32>
    %28 = arith.addf %25, %27 : vector<128x128xf32>
    %c0_21 = arith.constant 0 : index
    %c0_22 = arith.constant 0 : index
    %c0_23 = arith.constant 0 : index
    %29 = vector.load %arg5[%c0_21, %c0_22, %c0_23] : memref<1x128x128xf32, #tpu.memory_space<vmem>>, vector<1x128x128xf32>
    %30 = vector.shape_cast %29 : vector<1x128x128xf32> to vector<128x128xf32>
    %31 = vector.shape_cast %28 : vector<128x128xf32> to vector<1x128x128xf32>
    tpu.vector_store %arg5[%c0_21, %c0_22, %c0_23], %31 {strides = array<i32>} : memref<1x128x128xf32, #tpu.memory_space<vmem>>, vector<1x128x128xf32>,
    return
  }
  func.func @transform_0(%arg0: i32) -> (i32, i32, i32) {
    %c0_i32 = arith.constant 0 : i32
    %c0_i32_0 = arith.constant 0 : i32
    %c0_i32_1 = arith.constant 0 : i32
    return %arg0, %c0_i32, %c0_i32_0 : i32, i32, i32
  }
  func.func @transform_1(%arg0: i32) -> (i32, i32, i32) {
    %c0_i32 = arith.constant 0 : i32
    %c0_i32_0 = arith.constant 0 : i32
    %c0_i32_1 = arith.constant 0 : i32
    return %arg0, %c0_i32, %c0_i32_0 : i32, i32, i32
  }
  func.func @transform_2(%arg0: i32) -> (i32, i32) {
    %c0_i32 = arith.constant 0 : i32
    %c0_i32_0 = arith.constant 0 : i32
    %c0_i32_1 = arith.constant 0 : i32
    return %c0_i32, %c0_i32_0 : i32, i32
  }
  func.func @transform_3(%arg0: i32) -> (i32, i32) {
    %c0_i32 = arith.constant 0 : i32
    %c0_i32_0 = arith.constant 0 : i32
    %c0_i32_1 = arith.constant 0 : i32
    return %c0_i32, %c0_i32_0 : i32, i32
  }
  func.func @transform_4(%arg0: i32) -> (i32, i32, i32) {
    %c0_i32 = arith.constant 0 : i32
    %c0_i32_0 = arith.constant 0 : i32
    %c0_i32_1 = arith.constant 0 : i32
    return %arg0, %c0_i32, %c0_i32_0 : i32, i32, i32
  }
}

</mosaic_0001>

<llo_original>
// kernel: tpu_custom_call.1
$region0: #{tpu_custom_call.1}
  #allocation0 [shape = 'u32[]', space=smem, size = 0x4, offset = 0x4, fixed_abs, tag = 'smem constant byte address 0x4 - core index']
  #allocation1 [shape = 'u32[144,128]{1,0:T(1,128)}', space=vmem, size = 0x12000, scoped, tag = 'internal scratch']
  #allocation2 [shape = 'bf16[128,512]{1,0:T(16,128)(2,1)}', space=vmem, size = 0x20000, scoped, tag = 'scratch operand']
  %s0 = inlined_call_operand.hbm [shape: bf16[2,128,128], index: 0, kind: input, shape index: {}]
  %s1 = inlined_call_operand.hbm [shape: bf16[2,128,128], index: 1, kind: input, shape index: {}]
  %s2 = inlined_call_operand.hbm [shape: bf16[512,128], index: 2, kind: input, shape index: {}]
  %s3 = inlined_call_operand.hbm [shape: f32[1,128], index: 3, kind: input, shape index: {}]
  %s4 = inlined_call_operand.hbm [shape: f32[2,128,128], index: 4, kind: output, shape index: {}]
  %s5 = sld [smem:[#allocation0]]
  $region65: #{tpu_custom_call.1} parent=0
    _
  %s7 = ssub.s32 1, %s5
  %s8 = scalar_select 0, %s7, %s5
  $region1: #{tpu_custom_call.1} parent=0
    #allocation3 [shape = 'u8[65536]{0}', space=vmem, size = 0x10000, scoped, tag = 'input window, operand 0']
    #allocation4 [shape = 's32[2]{0}', space=sflag, size = 0x8, scoped, tag = 'scoped memory for tpu_custom_call.1']
    #allocation5 [shape = 's32[2]{0}', space=sflag, size = 0x8, scoped, tag = 'scoped memory for tpu_custom_call.1']
    #allocation6 [shape = 'u8[65536]{0}', space=vmem, size = 0x10000, scoped, tag = 'input window, operand 1']
    #allocation7 [shape = 's32[2]{0}', space=sflag, size = 0x8, scoped, tag = 'scoped memory for tpu_custom_call.1']
    #allocation8 [shape = 'u8[131072]{0}', space=vmem, size = 0x20000, scoped, tag = 'input window, operand 2, single buffered']
    #allocation9 [shape = 'u8[512]{0}', space=vmem, size = 0x400, scoped, tag = 'input window, operand 3, single buffered']
    #allocation10 [shape = 's32[1]{0}', space=sflag, size = 0x4, scoped, tag = 'scoped memory for tpu_custom_call.1']
    #allocation11 [shape = 'u8[131072]{0}', space=vmem, size = 0x20000, scoped, tag = 'output window, operand 0']
    %9 = vsyncpa [#allocation4], 0
    %s10 = scalar_lea.sflag [#allocation4], 1
    %11 = vsyncpa %s10, 0
    %12 = vsyncpa [#allocation7], 0
    %s13 = scalar_lea.sflag [#allocation7], 1
    %14 = vsyncpa %s13, 0
    %15 = vsyncpa [#allocation10], 0
    %16 = vsyncpa [#allocation5], 0
    %s17 = scalar_lea.sflag [#allocation5], 1
    %18 = vsyncpa %s17, 0
    loop: start=0, step=1, limit=4
    $region2: #{tpu_custom_call.1} parent=1 // loop_pre_header
      _
    $region3: #{tpu_custom_call.1} parent=1 // loop_header
      %s20 = sphi 0, %s24
      %p21 = scmp.ge.s32.totalorder %s20, 4
      %s30 = sphi 0, %s32
      %s33 = sphi 0, %s30
      %s34 = sphi 0, %s33
      %s50 = sphi 0, %s34
      %s56 = sphi 0, %s58
      %s59 = sphi 0, %s56
      %s60 = sphi 0, %s59
      %s76 = sphi 0, %s60
      %s80 = sphi 0, %s80
      %s82 = sphi 0, %s80
      %s83 = sphi 0, %s82
      %s97 = sphi 0, %s83
      %s101 = sphi 0, %s101
      %s103 = sphi 0, %s101
      %s104 = sphi 0, %s103
      %s118 = sphi 0, %s104
      %s124 = sphi 0, %s126
      %s127 = sphi 0, %s124
      %s128 = sphi 0, %s127
      %s144 = sphi 0, %s128
    $region4: #{tpu_custom_call.1} parent=1 // loop_header_branch
      %23 = sbr.rel (%p21) target = $region8
    $region5: #{tpu_custom_call.1} parent=1 // loop_body
      %s25 = ssub.s32 %s20, 1
      %s26 = ssub.s32 %s20, 2
      %s27 = sadd.s32 %s20, 1
      %s28 = ssub.s32 %s20, %s27
      %p29 = scmp.eq.s32.totalorder %s28, 0
      %s31 = sadd.s32 %s30, 1
      %s32 = scalar_select %p29, %s30, %s31
      %p35 = pneg %p29
      %p36 = scmp.eq.s32.totalorder %s20, 1
      %p37 = por %p35, %p36
      %p38 = scmp.ne.s32.totalorder %s30, %s33
      %p39 = scmp.eq.s32.totalorder %s20, 0
      %p40 = por %p38, %p39
      %p41 = scmp.ne.s32.totalorder %s30, %s33
      %p42 = scmp.eq.s32.totalorder %s25, 1
      %p43 = por %p41, %p42
      %p44 = scmp.ne.s32.totalorder %s33, %s34
      %p45 = scmp.eq.s32.totalorder %s25, 0
      %p46 = por %p44, %p45
      %p47 = scmp.ne.s32.totalorder %s33, %s34
      %p48 = scmp.eq.s32.totalorder %s26, 1
      %p49 = por %p47, %p48
      %p51 = scmp.ne.s32.totalorder %s34, %s50
      %p52 = scmp.eq.s32.totalorder %s26, 0
      %p53 = por %p51, %p52
      %s54 = ssub.s32 %s20, %s27
      %p55 = scmp.eq.s32.totalorder %s54, 0
      %s57 = sadd.s32 %s56, 1
      %s58 = scalar_select %p55, %s56, %s57
      %p61 = pneg %p55
      %p62 = scmp.eq.s32.totalorder %s20, 1
      %p63 = por %p61, %p62
      %p64 = scmp.ne.s32.totalorder %s56, %s59
      %p65 = scmp.eq.s32.totalorder %s20, 0
      %p66 = por %p64, %p65
      %p67 = scmp.ne.s32.totalorder %s56, %s59
      %p68 = scmp.eq.s32.totalorder %s25, 1
      %p69 = por %p67, %p68
      %p70 = scmp.ne.s32.totalorder %s59, %s60
      %p71 = scmp.eq.s32.totalorder %s25, 0
      %p72 = por %p70, %p71
      %p73 = scmp.ne.s32.totalorder %s59, %s60
      %p74 = scmp.eq.s32.totalorder %s26, 1
      %p75 = por %p73, %p74
      %p77 = scmp.ne.s32.totalorder %s60, %s76
      %p78 = scmp.eq.s32.totalorder %s26, 0
      %p79 = por %p77, %p78
      %s81 = sadd.s32 %s80, 1
      %p84 = scmp.eq.s32.totalorder %s20, 1
      %p85 = scmp.ne.s32.totalorder %s80, %s82
      %p86 = scmp.eq.s32.totalorder %s20, 0
      %p87 = por %p85, %p86
      %p88 = scmp.ne.s32.totalorder %s80, %s82
      %p89 = scmp.eq.s32.totalorder %s25, 1
      %p90 = por %p88, %p89
      %p91 = scmp.ne.s32.totalorder %s82, %s83
      %p92 = scmp.eq.s32.totalorder %s25, 0
      %p93 = por %p91, %p92
      %p94 = scmp.ne.s32.totalorder %s82, %s83
      %p95 = scmp.eq.s32.totalorder %s26, 1
      %p96 = por %p94, %p95
      %p98 = scmp.ne.s32.totalorder %s83, %s97
      %p99 = scmp.eq.s32.totalorder %s26, 0
      %p100 = por %p98, %p99
      %s102 = sadd.s32 %s101, 1
      %p105 = scmp.eq.s32.totalorder %s20, 1
      %p106 = scmp.ne.s32.totalorder %s101, %s103
      %p107 = scmp.eq.s32.totalorder %s20, 0
      %p108 = por %p106, %p107
      %p109 = scmp.ne.s32.totalorder %s101, %s103
      %p110 = scmp.eq.s32.totalorder %s25, 1
      %p111 = por %p109, %p110
      %p112 = scmp.ne.s32.totalorder %s103, %s104
      %p113 = scmp.eq.s32.totalorder %s25, 0
      %p114 = por %p112, %p113
      %p115 = scmp.ne.s32.totalorder %s103, %s104
      %p116 = scmp.eq.s32.totalorder %s26, 1
      %p117 = por %p115, %p116
      %p119 = scmp.ne.s32.totalorder %s104, %s118
      %p120 = scmp.eq.s32.totalorder %s26, 0
      %p121 = por %p119, %p120
      %s122 = ssub.s32 %s20, %s27
      %p123 = scmp.eq.s32.totalorder %s122, 0
      %s125 = sadd.s32 %s124, 1
      %s126 = scalar_select %p123, %s124, %s125
      %p129 = pneg %p123
      %p130 = scmp.eq.s32.totalorder %s20, 1
      %p131 = por %p129, %p130
      %p132 = scmp.ne.s32.totalorder %s124, %s127
      %p133 = scmp.eq.s32.totalorder %s20, 0
      %p134 = por %p132, %p133
      %p135 = scmp.ne.s32.totalorder %s124, %s127
      %p136 = scmp.eq.s32.totalorder %s25, 1
      %p137 = por %p135, %p136
      %p138 = scmp.ne.s32.totalorder %s127, %s128
      %p139 = scmp.eq.s32.totalorder %s25, 0
      %p140 = por %p138, %p139
      %p141 = scmp.ne.s32.totalorder %s127, %s128
      %p142 = scmp.eq.s32.totalorder %s26, 1
      %p143 = por %p141, %p142
      %p145 = scmp.ne.s32.totalorder %s128, %s144
      %p146 = scmp.eq.s32.totalorder %s26, 0
      %p147 = por %p145, %p146
      %p148 = scmp.le.s32.totalorder 1, %s20
      %p149 = scmp.lt.s32.totalorder %s20, 3
      %p150 = pnand %p148, %p149
      %p151 = pneg %p150
      // Predicated region
      $region9: #{tpu_custom_call.1} parent=5 // pred_check
        _
      $region10: #{tpu_custom_call.1} parent=5 // pred_check_branch
        %153 = sbr.rel (%p150) target = $region12
      $region11: #{tpu_custom_call.1} parent=5 // pred_region
        %s154 = ssub.s32 %s20, 1
        // Predicated region
        $region13: #{tpu_custom_call.1} parent=11 // pred_check
          %p155 = pneg %p93
        $region14: #{tpu_custom_call.1} parent=11 // pred_check_branch
          %157 = sbr.rel (%p155) target = $region16
        $region15: #{tpu_custom_call.1} parent=11 // pred_region
          %s159 = ssub.s32 4096, 4096
          %160 = vsyncadd [#allocation7], %s159
          %s161 = sshll.u32 [#allocation8], 4
          %s162 = int_to_ptr.vmem [resolvable:$true] %s161
          %167 = dma.hbm_to_vmem [thread:$0]  %s2, 4096, %s162, [#allocation7], 64, 64, 4
        $region16: #{tpu_custom_call.1} parent=11 // pred_fallthru
          _
        // Predicated region
        $region17: #{tpu_custom_call.1} parent=11 // pred_check
          %p168 = pneg %p114
        $region18: #{tpu_custom_call.1} parent=11 // pred_check_branch
          %170 = sbr.rel (%p168) target = $region20
        $region19: #{tpu_custom_call.1} parent=11 // pred_region
          %s172 = ssub.s32 16, 16
          %173 = vsyncadd [#allocation10], %s172
          %s175 = sshll.u32 [#allocation9], 4
          %s176 = int_to_ptr.vmem [resolvable:$true] %s175
          %178 = dma.hbm_to_vmem [thread:$0]  %s3, 16, %s176, [#allocation10]
        $region20: #{tpu_custom_call.1} parent=11 // pred_fallthru
          _
      $region12: #{tpu_custom_call.1} parent=5 // pred_fallthru
        _
      %p179 = scmp.lt.s32.totalorder %s20, 2
      // Predicated region
      $region21: #{tpu_custom_call.1} parent=5 // pred_check
        %p180 = pneg %p179
      $region22: #{tpu_custom_call.1} parent=5 // pred_check_branch
        %182 = sbr.rel (%p180) target = $region24
      $region23: #{tpu_custom_call.1} parent=5 // pred_region
        // Predicated region
        $region25: #{tpu_custom_call.1} parent=23 // pred_check
          %p183 = pneg %p40
        $region26: #{tpu_custom_call.1} parent=23 // pred_check_branch
          %185 = sbr.rel (%p183) target = $region28
        $region27: #{tpu_custom_call.1} parent=23 // pred_region
          %s186 = sand.u32 %s30, 1
          %s187 = scalar_lea.sflag [#allocation4], %s186
          %s188 = sand.u32 %s30, 1
          %s189 = smul.addr %s188, 64
          %s190 = scalar_lea.vmem [#allocation3], %s189
          %s192 = ssub.s32 1024, 1024
          %193 = vsyncadd %s187, %s192
          %s194 = smul.addr %s20, 16
          %s195 = smul.addr %s194, 64
          %s196 = scalar_lea.hbm %s0, %s195
          %s197 = sshll.u32 %s190, 4
          %s198 = int_to_ptr.vmem [resolvable:$true] %s197
          %203 = dma.hbm_to_vmem [thread:$0]  %s196, 1024, %s198, %s187, 64, 64, 4
        $region28: #{tpu_custom_call.1} parent=23 // pred_fallthru
          _
        // Predicated region
        $region29: #{tpu_custom_call.1} parent=23 // pred_check
          %p204 = pneg %p66
        $region30: #{tpu_custom_call.1} parent=23 // pred_check_branch
          %206 = sbr.rel (%p204) target = $region32
        $region31: #{tpu_custom_call.1} parent=23 // pred_region
          %s207 = sand.u32 %s20, 1
          %s208 = scalar_lea.sflag [#allocation7], %s207
          %s209 = sand.u32 %s56, 1
          %s210 = smul.addr %s209, 64
          %s211 = scalar_lea.vmem [#allocation6], %s210
          %s213 = ssub.s32 1024, 1024
          %214 = vsyncadd %s208, %s213
          %s215 = smul.addr %s20, 16
          %s216 = smul.addr %s215, 64
          %s217 = scalar_lea.hbm %s1, %s216
          %s218 = sshll.u32 %s211, 4
          %s219 = int_to_ptr.vmem [resolvable:$true] %s218
          %224 = dma.hbm_to_vmem [thread:$0]  %s217, 1024, %s219, %s208, 64, 64, 4
        $region32: #{tpu_custom_call.1} parent=23 // pred_fallthru
          _
      $region24: #{tpu_custom_call.1} parent=5 // pred_fallthru
        _
      %p225 = scmp.le.s32.totalorder 1, %s20
      %p226 = scmp.lt.s32.totalorder %s20, 3
      %p227 = pnand %p225, %p226
      %p228 = pneg %p227
      // Predicated region
      $region33: #{tpu_custom_call.1} parent=5 // pred_check
        _
      $region34: #{tpu_custom_call.1} parent=5 // pred_check_branch
        %230 = sbr.rel (%p227) target = $region36
      $region35: #{tpu_custom_call.1} parent=5 // pred_region
        %s231 = ssub.s32 %s20, 1
        %s232 = sand.u32 %s33, 1
        %s233 = scalar_lea.sflag [#allocation4], %s232
        %s234 = sand.u32 %s33, 1
        %s235 = smul.addr %s234, 64
        %s236 = scalar_lea.vmem [#allocation3], %s235
        // Predicated region
        $region37: #{tpu_custom_call.1} parent=35 // pred_check
          %p237 = pneg %p46
        $region38: #{tpu_custom_call.1} parent=35 // pred_check_branch
          %239 = sbr.rel (%p237) target = $region40
        $region39: #{tpu_custom_call.1} parent=35 // pred_region
          %240 = dma.done %s233, 1024
        $region40: #{tpu_custom_call.1} parent=35 // pred_fallthru
          _
        %s241 = sand.u32 %s25, 1
        %s242 = scalar_lea.sflag [#allocation7], %s241
        %s243 = sand.u32 %s59, 1
        %s244 = smul.addr %s243, 64
        %s245 = scalar_lea.vmem [#allocation6], %s244
        // Predicated region
        $region41: #{tpu_custom_call.1} parent=35 // pred_check
          %p246 = pneg %p72
        $region42: #{tpu_custom_call.1} parent=35 // pred_check_branch
          %248 = sbr.rel (%p246) target = $region44
        $region43: #{tpu_custom_call.1} parent=35 // pred_region
          %249 = dma.done %s242, 1024
        $region44: #{tpu_custom_call.1} parent=35 // pred_fallthru
          _
        // Predicated region
        $region45: #{tpu_custom_call.1} parent=35 // pred_check
          %p250 = pneg %p93
        $region46: #{tpu_custom_call.1} parent=35 // pred_check_branch
          %252 = sbr.rel (%p250) target = $region48
        $region47: #{tpu_custom_call.1} parent=35 // pred_region
          %253 = dma.done [#allocation7], 4096
        $region48: #{tpu_custom_call.1} parent=35 // pred_fallthru
          _
        // Predicated region
        $region49: #{tpu_custom_call.1} parent=35 // pred_check
          %p254 = pneg %p114
        $region50: #{tpu_custom_call.1} parent=35 // pred_check_branch
          %256 = sbr.rel (%p254) target = $region52
        $region51: #{tpu_custom_call.1} parent=35 // pred_region
          %257 = dma.done [#allocation10], 16
        $region52: #{tpu_custom_call.1} parent=35 // pred_fallthru
          _
        %s258 = sand.u32 %s33, 1
        %s259 = scalar_lea.sflag [#allocation4], %s258
        %s260 = sand.u32 %s33, 1
        %s261 = smul.addr %s260, 64
        %s262 = scalar_lea.vmem [#allocation3], %s261
        %p263 = pneg %p46
        %p264 = pneg %p43
        %s265 = sand.u32 %s25, 1
        %s266 = scalar_lea.sflag [#allocation7], %s265
        %s267 = sand.u32 %s59, 1
        %s268 = smul.addr %s267, 64
        %s269 = scalar_lea.vmem [#allocation6], %s268
        %p270 = pneg %p72
        %p271 = pneg %p69
        %p272 = pneg %p93
        %p273 = pneg %p90
        %p274 = pneg %p114
        %p275 = pneg %p111
        %p276 = pneg %p140
        %p277 = pneg %p137
        %s278 = sand.u32 %s127, 1
        %s279 = scalar_lea.sflag [#allocation5], %s278
        %s280 = sand.u32 %s127, 1
        %s281 = smul.addr %s280, 128
        %s282 = scalar_lea.vmem [#allocation11], %s281
        %v284 = vld [vmem:[%s236] sm:$0xf]
        %v285 = vld [vmem:[%s236 + $0x4] sm:$0xf]
        %v286 = vld [vmem:[%s236 + $0x8] sm:$0xf]
        %v287 = vld [vmem:[%s236 + $0xc] sm:$0xf]
        %v288 = vld [vmem:[%s236 + $0x10] sm:$0xf]
        %v289 = vld [vmem:[%s236 + $0x14] sm:$0xf]
        %v290 = vld [vmem:[%s236 + $0x18] sm:$0xf]
        %v291 = vld [vmem:[%s236 + $0x1c] sm:$0xf]
        %v292 = vld [vmem:[%s236 + $0x20] sm:$0xf]
        %v293 = vld [vmem:[%s236 + $0x24] sm:$0xf]
        %v294 = vld [vmem:[%s236 + $0x28] sm:$0xf]
        %v295 = vld [vmem:[%s236 + $0x2c] sm:$0xf]
        %v296 = vld [vmem:[%s236 + $0x30] sm:$0xf]
        %v297 = vld [vmem:[%s236 + $0x34] sm:$0xf]
        %v298 = vld [vmem:[%s236 + $0x38] sm:$0xf]
        %v299 = vld [vmem:[%s236 + $0x3c] sm:$0xf]
        %v300 = vld [vmem:[%s245] sm:$0xf]
        %v301 = vld [vmem:[%s245 + $0x4] sm:$0xf]
        %v302 = vld [vmem:[%s245 + $0x8] sm:$0xf]
        %v303 = vld [vmem:[%s245 + $0xc] sm:$0xf]
        %v304 = vld [vmem:[%s245 + $0x10] sm:$0xf]
        %v305 = vld [vmem:[%s245 + $0x14] sm:$0xf]
        %v306 = vld [vmem:[%s245 + $0x18] sm:$0xf]
        %v307 = vld [vmem:[%s245 + $0x1c] sm:$0xf]
        %v308 = vld [vmem:[%s245 + $0x20] sm:$0xf]
        %v309 = vld [vmem:[%s245 + $0x24] sm:$0xf]
        %v310 = vld [vmem:[%s245 + $0x28] sm:$0xf]
        %v311 = vld [vmem:[%s245 + $0x2c] sm:$0xf]
        %v312 = vld [vmem:[%s245 + $0x30] sm:$0xf]
        %v313 = vld [vmem:[%s245 + $0x34] sm:$0xf]
        %v314 = vld [vmem:[%s245 + $0x38] sm:$0xf]
        %v315 = vld [vmem:[%s245 + $0x3c] sm:$0xf]
        %v332 = vunpack.c.l.b16 %v284
        %v333 = vunpack.c.l.b16 %v285
        %v334 = vunpack.c.l.b16 %v286
        %v335 = vunpack.c.l.b16 %v287
        %v336 = vunpack.c.l.b16 %v288
        %v337 = vunpack.c.l.b16 %v289
        %v338 = vunpack.c.l.b16 %v290
        %v339 = vunpack.c.l.b16 %v291
        %v340 = vunpack.c.l.b16 %v292
        %v341 = vunpack.c.l.b16 %v293
        %v342 = vunpack.c.l.b16 %v294
        %v343 = vunpack.c.l.b16 %v295
        %v344 = vunpack.c.l.b16 %v296
        %v345 = vunpack.c.l.b16 %v297
        %v346 = vunpack.c.l.b16 %v298
        %v347 = vunpack.c.l.b16 %v299
        %v348 = vpack.c.b16 %v333, %v332
        %v349 = vpack.c.b16 %v335, %v334
        %v350 = vpack.c.b16 %v337, %v336
        %v351 = vpack.c.b16 %v339, %v338
        %v352 = vpack.c.b16 %v341, %v340
        %v353 = vpack.c.b16 %v343, %v342
        %v354 = vpack.c.b16 %v345, %v344
        %v355 = vpack.c.b16 %v347, %v346
        %364 = vst [vmem:[#allocation2] sm:$0xff] %v348
        %365 = vst [vmem:[#allocation2 + $0x20] sm:$0xff] %v349
        %366 = vst [vmem:[#allocation2 + $0x40] sm:$0xff] %v350
        %367 = vst [vmem:[#allocation2 + $0x60] sm:$0xff] %v351
        %368 = vst [vmem:[#allocation2 + $0x80] sm:$0xff] %v352
        %369 = vst [vmem:[#allocation2 + $0xa0] sm:$0xff] %v353
        %370 = vst [vmem:[#allocation2 + $0xc0] sm:$0xff] %v354
        %371 = vst [vmem:[#allocation2 + $0xe0] sm:$0xff] %v355
        %v388 = vunpack.c.l.b16 %v300
        %v389 = vunpack.c.l.b16 %v301
        %v390 = vunpack.c.l.b16 %v302
        %v391 = vunpack.c.l.b16 %v303
        %v392 = vunpack.c.l.b16 %v304
        %v393 = vunpack.c.l.b16 %v305
        %v394 = vunpack.c.l.b16 %v306
        %v395 = vunpack.c.l.b16 %v307
        %v396 = vunpack.c.l.b16 %v308
        %v397 = vunpack.c.l.b16 %v309
        %v398 = vunpack.c.l.b16 %v310
        %v399 = vunpack.c.l.b16 %v311
        %v400 = vunpack.c.l.b16 %v312
        %v401 = vunpack.c.l.b16 %v313
        %v402 = vunpack.c.l.b16 %v314
        %v403 = vunpack.c.l.b16 %v315
        %v404 = vpack.c.b16 %v389, %v388
        %v405 = vpack.c.b16 %v391, %v390
        %v406 = vpack.c.b16 %v393, %v392
        %v407 = vpack.c.b16 %v395, %v394
        %v408 = vpack.c.b16 %v397, %v396
        %v409 = vpack.c.b16 %v399, %v398
        %v410 = vpack.c.b16 %v401, %v400
        %v411 = vpack.c.b16 %v403, %v402
        %420 = vmatprep.subr.bf16.mxu0 0
        %421 = vmatpush1.bf16.msra.mxu0 %v348
        %422 = vmatprep.subr.bf16.mxu0 0
        %423 = vmatpush1.bf16.msra.mxu0 %v349
        %424 = vmatprep.subr.bf16.mxu0 0
        %425 = vmatpush1.bf16.msra.mxu0 %v350
        %426 = vmatprep.subr.bf16.mxu0 0
        %427 = vmatpush1.bf16.msra.mxu0 %v351
        %428 = vmatprep.subr.bf16.mxu0 0
        %429 = vmatpush1.bf16.msra.mxu0 %v352
        %430 = vmatprep.subr.bf16.mxu0 0
        %431 = vmatpush1.bf16.msra.mxu0 %v353
        %432 = vmatprep.subr.bf16.mxu0 0
        %433 = vmatpush1.bf16.msra.mxu0 %v354
        %434 = vmatprep.subr.bf16.mxu0 0
        %435 = vmatpush1.bf16.msra.mxu0 %v355
        %436 = vmatprep.subr.bf16.mxu0 0
        %437 = vmatpush1.bf16.msra.mxu0 0
        %438 = vmatprep.subr.bf16.mxu0 0
        %439 = vmatpush1.bf16.msra.mxu0 0
        %440 = vmatprep.subr.bf16.mxu0 0
        %441 = vmatpush1.bf16.msra.mxu0 0
        %442 = vmatprep.subr.bf16.mxu0 0
        %443 = vmatpush1.bf16.msra.mxu0 0
        %444 = vmatprep.subr.bf16.mxu0 0
        %445 = vmatpush1.bf16.msra.mxu0 0
        %446 = vmatprep.subr.bf16.mxu0 0
        %447 = vmatpush1.bf16.msra.mxu0 0
        %448 = vmatprep.subr.bf16.mxu0 0
        %449 = vmatpush1.bf16.msra.mxu0 0
        %450 = vmatprep.subr.bf16.mxu0 0
        %451 = vmatpush1.bf16.msra.mxu0 0
        %452 = vmatprep.mubr.bf16.mxu0 0
        %453 = vmatmul.mubr.bf16.gmra.mrb[0].mxu0 %v404
        %v454 = vpop.f32.mrb[0].mxu0
        %v455 = vadd.f32 0.0, %v454
        %v456 = vpop.f32.mrb[0].mxu0
        %v457 = vpop.f32.mrb[0].mxu0
        %v458 = vadd.f32 0.0, %v457
        %v459 = vpop.f32.mrb[0].mxu0
        %460 = vmatprep.mubr.bf16.mxu0 0
        %461 = vmatmul.mubr.bf16.gmra.mrb[0].mxu0 %v405
        %v462 = vpop.f32.mrb[0].mxu0
        %v463 = vadd.f32 0.0, %v462
        %v464 = vpop.f32.mrb[0].mxu0
        %v465 = vpop.f32.mrb[0].mxu0
        %v466 = vadd.f32 0.0, %v465
        %v467 = vpop.f32.mrb[0].mxu0
        %468 = vmatprep.mubr.bf16.mxu0 0
        %469 = vmatmul.mubr.bf16.gmra.mrb[0].mxu0 %v406
        %v470 = vpop.f32.mrb[0].mxu0
        %v471 = vadd.f32 0.0, %v470
        %v472 = vpop.f32.mrb[0].mxu0
        %v473 = vpop.f32.mrb[0].mxu0
        %v474 = vadd.f32 0.0, %v473
        %v475 = vpop.f32.mrb[0].mxu0
        %476 = vmatprep.mubr.bf16.mxu0 0
        %477 = vmatmul.mubr.bf16.gmra.mrb[0].mxu0 %v407
        %v478 = vpop.f32.mrb[0].mxu0
        %v479 = vadd.f32 0.0, %v478
        %v480 = vpop.f32.mrb[0].mxu0
        %v481 = vpop.f32.mrb[0].mxu0
        %v482 = vadd.f32 0.0, %v481
        %v483 = vpop.f32.mrb[0].mxu0
        %484 = vmatprep.mubr.bf16.mxu0 0
        %485 = vmatmul.mubr.bf16.gmra.mrb[0].mxu0 %v408
        %v486 = vpop.f32.mrb[0].mxu0
        %v487 = vadd.f32 0.0, %v486
        %v488 = vpop.f32.mrb[0].mxu0
        %v489 = vpop.f32.mrb[0].mxu0
        %v490 = vadd.f32 0.0, %v489
        %v491 = vpop.f32.mrb[0].mxu0
        %492 = vmatprep.mubr.bf16.mxu0 0
        %493 = vmatmul.mubr.bf16.gmra.mrb[0].mxu0 %v409
        %v494 = vpop.f32.mrb[0].mxu0
        %v495 = vadd.f32 0.0, %v494
        %v496 = vpop.f32.mrb[0].mxu0
        %v497 = vpop.f32.mrb[0].mxu0
        %v498 = vadd.f32 0.0, %v497
        %v499 = vpop.f32.mrb[0].mxu0
        %500 = vmatprep.mubr.bf16.mxu0 0
        %501 = vmatmul.mubr.bf16.gmra.mrb[0].mxu0 %v410
        %v502 = vpop.f32.mrb[0].mxu0
        %v503 = vadd.f32 0.0, %v502
        %v504 = vpop.f32.mrb[0].mxu0
        %v505 = vpop.f32.mrb[0].mxu0
        %v506 = vadd.f32 0.0, %v505
        %v507 = vpop.f32.mrb[0].mxu0
        %508 = vmatprep.mubr.bf16.mxu0 0
        %509 = vmatmul.mubr.bf16.gmra.mrb[0].mxu0 %v411
        %v510 = vpop.f32.mrb[0].mxu0
        %v511 = vadd.f32 0.0, %v510
        %v512 = vpop.f32.mrb[0].mxu0
        %v513 = vpop.f32.mrb[0].mxu0
        %v514 = vadd.f32 0.0, %v513
        %v515 = vpop.f32.mrb[0].mxu0
        %516 = vdwg.mxu0
        %v517 = vpack.c.bf16 %v458, %v455
        %v518 = vpack.c.bf16 %v466, %v463
        %v519 = vpack.c.bf16 %v474, %v471
        %v520 = vpack.c.bf16 %v482, %v479
        %v521 = vpack.c.bf16 %v490, %v487
        %v522 = vpack.c.bf16 %v498, %v495
        %v523 = vpack.c.bf16 %v506, %v503
        %v524 = vpack.c.bf16 %v514, %v511
        %525 = vst [vmem:[#allocation2 + $0x8] sm:$0xff] %v517
        %526 = vst [vmem:[#allocation2 + $0x28] sm:$0xff] %v518
        %527 = vst [vmem:[#allocation2 + $0x48] sm:$0xff] %v519
        %528 = vst [vmem:[#allocation2 + $0x68] sm:$0xff] %v520
        %529 = vst [vmem:[#allocation2 + $0x88] sm:$0xff] %v521
        %530 = vst [vmem:[#allocation2 + $0xa8] sm:$0xff] %v522
        %531 = vst [vmem:[#allocation2 + $0xc8] sm:$0xff] %v523
        %532 = vst [vmem:[#allocation2 + $0xe8] sm:$0xff] %v524
        %v533 = vunpack.c.l.bf16 %v284
        %v534 = vunpack.c.l.bf16 %v285
        %v535 = vunpack.c.l.bf16 %v286
        %v536 = vunpack.c.l.bf16 %v287
        %v537 = vunpack.c.l.bf16 %v288
        %v538 = vunpack.c.l.bf16 %v289
        %v539 = vunpack.c.l.bf16 %v290
        %v540 = vunpack.c.l.bf16 %v291
        %v541 = vunpack.c.l.bf16 %v292
        %v542 = vunpack.c.l.bf16 %v293
        %v543 = vunpack.c.l.bf16 %v294
        %v544 = vunpack.c.l.bf16 %v295
        %v545 = vunpack.c.l.bf16 %v296
        %v546 = vunpack.c.l.bf16 %v297
        %v547 = vunpack.c.l.bf16 %v298
        %v548 = vunpack.c.l.bf16 %v299
        %549 = vmatprep.subr.bf16.mxu0 0
        %550 = vmatpush1.bf16.msra.mxu0 %v517
        %551 = vmatprep.subr.bf16.mxu0 0
        %552 = vmatpush1.bf16.msra.mxu0 %v518
        %553 = vmatprep.subr.bf16.mxu0 0
        %554 = vmatpush1.bf16.msra.mxu0 %v519
        %555 = vmatprep.subr.bf16.mxu0 0
        %556 = vmatpush1.bf16.msra.mxu0 %v520
        %557 = vmatprep.subr.bf16.mxu0 0
        %558 = vmatpush1.bf16.msra.mxu0 %v521
        %559 = vmatprep.subr.bf16.mxu0 0
        %560 = vmatpush1.bf16.msra.mxu0 %v522
        %561 = vmatprep.subr.bf16.mxu0 0
        %562 = vmatpush1.bf16.msra.mxu0 %v523
        %563 = vmatprep.subr.bf16.mxu0 0
        %564 = vmatpush1.bf16.msra.mxu0 %v524
        %565 = vmatprep.subr.bf16.mxu0 0
        %566 = vmatpush1.bf16.msra.mxu0 0
        %567 = vmatprep.subr.bf16.mxu0 0
        %568 = vmatpush1.bf16.msra.mxu0 0
        %569 = vmatprep.subr.bf16.mxu0 0
        %570 = vmatpush1.bf16.msra.mxu0 0
        %571 = vmatprep.subr.bf16.mxu0 0
        %572 = vmatpush1.bf16.msra.mxu0 0
        %573 = vmatprep.subr.bf16.mxu0 0
        %574 = vmatpush1.bf16.msra.mxu0 0
        %575 = vmatprep.subr.bf16.mxu0 0
        %576 = vmatpush1.bf16.msra.mxu0 0
        %577 = vmatprep.subr.bf16.mxu0 0
        %578 = vmatpush1.bf16.msra.mxu0 0
        %579 = vmatprep.subr.bf16.mxu0 0
        %580 = vmatpush1.bf16.msra.mxu0 0
        %581 = vmatprep.mubr.bf16.mxu0 0
        %582 = vmatmul.mubr.bf16.gmra.mrb[0].mxu0 %v404
        %v583 = vpop.f32.mrb[0].mxu0
        %v584 = vadd.f32 0.0, %v583
        %v585 = vpop.f32.mrb[0].mxu0
        %v586 = vpop.f32.mrb[0].mxu0
        %v587 = vadd.f32 0.0, %v586
        %v588 = vpop.f32.mrb[0].mxu0
        %589 = vmatprep.mubr.bf16.mxu0 0
        %590 = vmatmul.mubr.bf16.gmra.mrb[0].mxu0 %v405
        %v591 = vpop.f32.mrb[0].mxu0
        %v592 = vadd.f32 0.0, %v591
        %v593 = vpop.f32.mrb[0].mxu0
        %v594 = vpop.f32.mrb[0].mxu0
        %v595 = vadd.f32 0.0, %v594
        %v596 = vpop.f32.mrb[0].mxu0
        %597 = vmatprep.mubr.bf16.mxu0 0
        %598 = vmatmul.mubr.bf16.gmra.mrb[0].mxu0 %v406
        %v599 = vpop.f32.mrb[0].mxu0
        %v600 = vadd.f32 0.0, %v599
        %v601 = vpop.f32.mrb[0].mxu0
        %v602 = vpop.f32.mrb[0].mxu0
        %v603 = vadd.f32 0.0, %v602
        %v604 = vpop.f32.mrb[0].mxu0
        %605 = vmatprep.mubr.bf16.mxu0 0
        %606 = vmatmul.mubr.bf16.gmra.mrb[0].mxu0 %v407
        %v607 = vpop.f32.mrb[0].mxu0
        %v608 = vadd.f32 0.0, %v607
        %v609 = vpop.f32.mrb[0].mxu0
        %v610 = vpop.f32.mrb[0].mxu0
        %v611 = vadd.f32 0.0, %v610
        %v612 = vpop.f32.mrb[0].mxu0
        %613 = vmatprep.mubr.bf16.mxu0 0
        %614 = vmatmul.mubr.bf16.gmra.mrb[0].mxu0 %v408
        %v615 = vpop.f32.mrb[0].mxu0
        %v616 = vadd.f32 0.0, %v615
        %v617 = vpop.f32.mrb[0].mxu0
        %v618 = vpop.f32.mrb[0].mxu0
        %v619 = vadd.f32 0.0, %v618
        %v620 = vpop.f32.mrb[0].mxu0
        %621 = vmatprep.mubr.bf16.mxu0 0
        %622 = vmatmul.mubr.bf16.gmra.mrb[0].mxu0 %v409
        %v623 = vpop.f32.mrb[0].mxu0
        %v624 = vadd.f32 0.0, %v623
        %v625 = vpop.f32.mrb[0].mxu0
        %v626 = vpop.f32.mrb[0].mxu0
        %v627 = vadd.f32 0.0, %v626
        %v628 = vpop.f32.mrb[0].mxu0
        %629 = vmatprep.mubr.bf16.mxu0 0
        %630 = vmatmul.mubr.bf16.gmra.mrb[0].mxu0 %v410
        %v631 = vpop.f32.mrb[0].mxu0
        %v632 = vadd.f32 0.0, %v631
        %v633 = vpop.f32.mrb[0].mxu0
        %v634 = vpop.f32.mrb[0].mxu0
        %v635 = vadd.f32 0.0, %v634
        %v636 = vpop.f32.mrb[0].mxu0
        %637 = vmatprep.mubr.bf16.mxu0 0
        %638 = vmatmul.mubr.bf16.gmra.mrb[0].mxu0 %v411
        %v639 = vpop.f32.mrb[0].mxu0
        %v640 = vadd.f32 0.0, %v639
        %v641 = vpop.f32.mrb[0].mxu0
        %v642 = vpop.f32.mrb[0].mxu0
        %v643 = vadd.f32 0.0, %v642
        %v644 = vpop.f32.mrb[0].mxu0
        %645 = vdwg.mxu0
        %v646 = vmul.f32 %v584, 2.0
        %v647 = vmul.f32 %v587, 2.0
        %v648 = vmul.f32 %v592, 2.0
        %v649 = vmul.f32 %v595, 2.0
        %v650 = vmul.f32 %v600, 2.0
        %v651 = vmul.f32 %v603, 2.0
        %v652 = vmul.f32 %v608, 2.0
        %v653 = vmul.f32 %v611, 2.0
        %v654 = vmul.f32 %v616, 2.0
        %v655 = vmul.f32 %v619, 2.0
        %v656 = vmul.f32 %v624, 2.0
        %v657 = vmul.f32 %v627, 2.0
        %v658 = vmul.f32 %v632, 2.0
        %v659 = vmul.f32 %v635, 2.0
        %v660 = vmul.f32 %v640, 2.0
        %v661 = vmul.f32 %v643, 2.0
        %v662 = vsub.f32 %v646, %v533
        %v663 = vsub.f32 %v647, %v534
        %v664 = vsub.f32 %v648, %v535
        %v665 = vsub.f32 %v649, %v536
        %v666 = vsub.f32 %v650, %v537
        %v667 = vsub.f32 %v651, %v538
        %v668 = vsub.f32 %v652, %v539
        %v669 = vsub.f32 %v653, %v540
        %v670 = vsub.f32 %v654, %v541
        %v671 = vsub.f32 %v655, %v542
        %v672 = vsub.f32 %v656, %v543
        %v673 = vsub.f32 %v657, %v544
        %v674 = vsub.f32 %v658, %v545
        %v675 = vsub.f32 %v659, %v546
        %v676 = vsub.f32 %v660, %v547
        %v677 = vsub.f32 %v661, %v548
        %v678 = vpack.c.bf16 %v663, %v662
        %v679 = vpack.c.bf16 %v665, %v664
        %v680 = vpack.c.bf16 %v667, %v666
        %v681 = vpack.c.bf16 %v669, %v668
        %v682 = vpack.c.bf16 %v671, %v670
        %v683 = vpack.c.bf16 %v673, %v672
        %v684 = vpack.c.bf16 %v675, %v674
        %v685 = vpack.c.bf16 %v677, %v676
        %686 = vst [vmem:[#allocation2 + $0x10] sm:$0xff] %v678
        %687 = vst [vmem:[#allocation2 + $0x30] sm:$0xff] %v679
        %688 = vst [vmem:[#allocation2 + $0x50] sm:$0xff] %v680
        %689 = vst [vmem:[#allocation2 + $0x70] sm:$0xff] %v681
        %690 = vst [vmem:[#allocation2 + $0x90] sm:$0xff] %v682
        %691 = vst [vmem:[#allocation2 + $0xb0] sm:$0xff] %v683
        %692 = vst [vmem:[#allocation2 + $0xd0] sm:$0xff] %v684
        %693 = vst [vmem:[#allocation2 + $0xf0] sm:$0xff] %v685
        %694 = vmatprep.subr.bf16.mxu0 0
        %695 = vmatpush1.bf16.msra.mxu0 %v678
        %696 = vmatprep.subr.bf16.mxu0 0
        %697 = vmatpush1.bf16.msra.mxu0 %v679
        %698 = vmatprep.subr.bf16.mxu0 0
        %699 = vmatpush1.bf16.msra.mxu0 %v680
        %700 = vmatprep.subr.bf16.mxu0 0
        %701 = vmatpush1.bf16.msra.mxu0 %v681
        %702 = vmatprep.subr.bf16.mxu0 0
        %703 = vmatpush1.bf16.msra.mxu0 %v682
        %704 = vmatprep.subr.bf16.mxu0 0
        %705 = vmatpush1.bf16.msra.mxu0 %v683
        %706 = vmatprep.subr.bf16.mxu0 0
        %707 = vmatpush1.bf16.msra.mxu0 %v684
        %708 = vmatprep.subr.bf16.mxu0 0
        %709 = vmatpush1.bf16.msra.mxu0 %v685
        %710 = vmatprep.subr.bf16.mxu0 0
        %711 = vmatpush1.bf16.msra.mxu0 0
        %712 = vmatprep.subr.bf16.mxu0 0
        %713 = vmatpush1.bf16.msra.mxu0 0
        %714 = vmatprep.subr.bf16.mxu0 0
        %715 = vmatpush1.bf16.msra.mxu0 0
        %716 = vmatprep.subr.bf16.mxu0 0
        %717 = vmatpush1.bf16.msra.mxu0 0
        %718 = vmatprep.subr.bf16.mxu0 0
        %719 = vmatpush1.bf16.msra.mxu0 0
        %720 = vmatprep.subr.bf16.mxu0 0
        %721 = vmatpush1.bf16.msra.mxu0 0
        %722 = vmatprep.subr.bf16.mxu0 0
        %723 = vmatpush1.bf16.msra.mxu0 0
        %724 = vmatprep.subr.bf16.mxu0 0
        %725 = vmatpush1.bf16.msra.mxu0 0
        %726 = vmatprep.mubr.bf16.mxu0 0
        %727 = vmatmul.mubr.bf16.gmra.mrb[0].mxu0 %v404
        %v728 = vpop.f32.mrb[0].mxu0
        %v729 = vadd.f32 0.0, %v728
        %v730 = vpop.f32.mrb[0].mxu0
        %v731 = vpop.f32.mrb[0].mxu0
        %v732 = vadd.f32 0.0, %v731
        %v733 = vpop.f32.mrb[0].mxu0
        %734 = vmatprep.mubr.bf16.mxu0 0
        %735 = vmatmul.mubr.bf16.gmra.mrb[0].mxu0 %v405
        %v736 = vpop.f32.mrb[0].mxu0
        %v737 = vadd.f32 0.0, %v736
        %v738 = vpop.f32.mrb[0].mxu0
        %v739 = vpop.f32.mrb[0].mxu0
        %v740 = vadd.f32 0.0, %v739
        %v741 = vpop.f32.mrb[0].mxu0
        %742 = vmatprep.mubr.bf16.mxu0 0
        %743 = vmatmul.mubr.bf16.gmra.mrb[0].mxu0 %v406
        %v744 = vpop.f32.mrb[0].mxu0
        %v745 = vadd.f32 0.0, %v744
        %v746 = vpop.f32.mrb[0].mxu0
        %v747 = vpop.f32.mrb[0].mxu0
        %v748 = vadd.f32 0.0, %v747
        %v749 = vpop.f32.mrb[0].mxu0
        %750 = vmatprep.mubr.bf16.mxu0 0
        %751 = vmatmul.mubr.bf16.gmra.mrb[0].mxu0 %v407
        %v752 = vpop.f32.mrb[0].mxu0
        %v753 = vadd.f32 0.0, %v752
        %v754 = vpop.f32.mrb[0].mxu0
        %v755 = vpop.f32.mrb[0].mxu0
        %v756 = vadd.f32 0.0, %v755
        %v757 = vpop.f32.mrb[0].mxu0
        %758 = vmatprep.mubr.bf16.mxu0 0
        %759 = vmatmul.mubr.bf16.gmra.mrb[0].mxu0 %v408
        %v760 = vpop.f32.mrb[0].mxu0
        %v761 = vadd.f32 0.0, %v760
        %v762 = vpop.f32.mrb[0].mxu0
        %v763 = vpop.f32.mrb[0].mxu0
        %v764 = vadd.f32 0.0, %v763
        %v765 = vpop.f32.mrb[0].mxu0
        %766 = vmatprep.mubr.bf16.mxu0 0
        %767 = vmatmul.mubr.bf16.gmra.mrb[0].mxu0 %v409
        %v768 = vpop.f32.mrb[0].mxu0
        %v769 = vadd.f32 0.0, %v768
        %v770 = vpop.f32.mrb[0].mxu0
        %v771 = vpop.f32.mrb[0].mxu0
        %v772 = vadd.f32 0.0, %v771
        %v773 = vpop.f32.mrb[0].mxu0
        %774 = vmatprep.mubr.bf16.mxu0 0
        %775 = vmatmul.mubr.bf16.gmra.mrb[0].mxu0 %v410
        %v776 = vpop.f32.mrb[0].mxu0
        %v777 = vadd.f32 0.0, %v776
        %v778 = vpop.f32.mrb[0].mxu0
        %v779 = vpop.f32.mrb[0].mxu0
        %v780 = vadd.f32 0.0, %v779
        %v781 = vpop.f32.mrb[0].mxu0
        %782 = vmatprep.mubr.bf16.mxu0 0
        %783 = vmatmul.mubr.bf16.gmra.mrb[0].mxu0 %v411
        %v784 = vpop.f32.mrb[0].mxu0
        %v785 = vadd.f32 0.0, %v784
        %v786 = vpop.f32.mrb[0].mxu0
        %v787 = vpop.f32.mrb[0].mxu0
        %v788 = vadd.f32 0.0, %v787
        %v789 = vpop.f32.mrb[0].mxu0
        %790 = vdwg.mxu0
        %v791 = vmul.f32 %v729, 2.0
        %v792 = vmul.f32 %v732, 2.0
        %v793 = vmul.f32 %v737, 2.0
        %v794 = vmul.f32 %v740, 2.0
        %v795 = vmul.f32 %v745, 2.0
        %v796 = vmul.f32 %v748, 2.0
        %v797 = vmul.f32 %v753, 2.0
        %v798 = vmul.f32 %v756, 2.0
        %v799 = vmul.f32 %v761, 2.0
        %v800 = vmul.f32 %v764, 2.0
        %v801 = vmul.f32 %v769, 2.0
        %v802 = vmul.f32 %v772, 2.0
        %v803 = vmul.f32 %v777, 2.0
        %v804 = vmul.f32 %v780, 2.0
        %v805 = vmul.f32 %v785, 2.0
        %v806 = vmul.f32 %v788, 2.0
        %v807 = vsub.f32 %v791, %v455
        %v808 = vsub.f32 %v792, %v458
        %v809 = vsub.f32 %v793, %v463
        %v810 = vsub.f32 %v794, %v466
        %v811 = vsub.f32 %v795, %v471
        %v812 = vsub.f32 %v796, %v474
        %v813 = vsub.f32 %v797, %v479
        %v814 = vsub.f32 %v798, %v482
        %v815 = vsub.f32 %v799, %v487
        %v816 = vsub.f32 %v800, %v490
        %v817 = vsub.f32 %v801, %v495
        %v818 = vsub.f32 %v802, %v498
        %v819 = vsub.f32 %v803, %v503
        %v820 = vsub.f32 %v804, %v506
        %v821 = vsub.f32 %v805, %v511
        %v822 = vsub.f32 %v806, %v514
        %v823 = vpack.c.bf16 %v808, %v807
        %v824 = vpack.c.bf16 %v810, %v809
        %v825 = vpack.c.bf16 %v812, %v811
        %v826 = vpack.c.bf16 %v814, %v813
        %v827 = vpack.c.bf16 %v816, %v815
        %v828 = vpack.c.bf16 %v818, %v817
        %v829 = vpack.c.bf16 %v820, %v819
        %v830 = vpack.c.bf16 %v822, %v821
        %831 = vst [vmem:[#allocation2 + $0x18] sm:$0xff] %v823
        %832 = vst [vmem:[#allocation2 + $0x38] sm:$0xff] %v824
        %833 = vst [vmem:[#allocation2 + $0x58] sm:$0xff] %v825
        %834 = vst [vmem:[#allocation2 + $0x78] sm:$0xff] %v826
        %835 = vst [vmem:[#allocation2 + $0x98] sm:$0xff] %v827
        %836 = vst [vmem:[#allocation2 + $0xb8] sm:$0xff] %v828
        %837 = vst [vmem:[#allocation2 + $0xd8] sm:$0xff] %v829
        %838 = vst [vmem:[#allocation2 + $0xf8] sm:$0xff] %v830
        %v839 = vld [vmem:[#allocation2] sm:$0xff]
        %v840 = vld [vmem:[#allocation2 + $0x8] sm:$0xff]
        %v841 = vld [vmem:[#allocation2 + $0x10] sm:$0xff]
        %v842 = vld [vmem:[#allocation2 + $0x18] sm:$0xff]
        %v843 = vld [vmem:[#allocation2 + $0x20] sm:$0xff]
        %v844 = vld [vmem:[#allocation2 + $0x28] sm:$0xff]
        %v845 = vld [vmem:[#allocation2 + $0x30] sm:$0xff]
        %v846 = vld [vmem:[#allocation2 + $0x38] sm:$0xff]
        %v847 = vld [vmem:[#allocation2 + $0x40] sm:$0xff]
        %v848 = vld [vmem:[#allocation2 + $0x48] sm:$0xff]
        %v849 = vld [vmem:[#allocation2 + $0x50] sm:$0xff]
        %v850 = vld [vmem:[#allocation2 + $0x58] sm:$0xff]
        %v851 = vld [vmem:[#allocation2 + $0x60] sm:$0xff]
        %v852 = vld [vmem:[#allocation2 + $0x68] sm:$0xff]
        %v853 = vld [vmem:[#allocation2 + $0x70] sm:$0xff]
        %v854 = vld [vmem:[#allocation2 + $0x78] sm:$0xff]
        %v855 = vld [vmem:[#allocation2 + $0x80] sm:$0xff]
        %v856 = vld [vmem:[#allocation2 + $0x88] sm:$0xff]
        %v857 = vld [vmem:[#allocation2 + $0x90] sm:$0xff]
        %v858 = vld [vmem:[#allocation2 + $0x98] sm:$0xff]
        %v859 = vld [vmem:[#allocation2 + $0xa0] sm:$0xff]
        %v860 = vld [vmem:[#allocation2 + $0xa8] sm:$0xff]
        %v861 = vld [vmem:[#allocation2 + $0xb0] sm:$0xff]
        %v862 = vld [vmem:[#allocation2 + $0xb8] sm:$0xff]
        %v863 = vld [vmem:[#allocation2 + $0xc0] sm:$0xff]
        %v864 = vld [vmem:[#allocation2 + $0xc8] sm:$0xff]
        %v865 = vld [vmem:[#allocation2 + $0xd0] sm:$0xff]
        %v866 = vld [vmem:[#allocation2 + $0xd8] sm:$0xff]
        %v867 = vld [vmem:[#allocation2 + $0xe0] sm:$0xff]
        %v868 = vld [vmem:[#allocation2 + $0xe8] sm:$0xff]
        %v869 = vld [vmem:[#allocation2 + $0xf0] sm:$0xff]
        %v870 = vld [vmem:[#allocation2 + $0xf8] sm:$0xff]
        %v871 = vld [vmem:[#allocation8] sm:$0xf]
        %v872 = vld [vmem:[#allocation8 + $0x4] sm:$0xf]
        %v873 = vld [vmem:[#allocation8 + $0x8] sm:$0xf]
        %v874 = vld [vmem:[#allocation8 + $0xc] sm:$0xf]
        %v875 = vld [vmem:[#allocation8 + $0x10] sm:$0xf]
        %v876 = vld [vmem:[#allocation8 + $0x14] sm:$0xf]
        %v877 = vld [vmem:[#allocation8 + $0x18] sm:$0xf]
        %v878 = vld [vmem:[#allocation8 + $0x1c] sm:$0xf]
        %v879 = vld [vmem:[#allocation8 + $0x20] sm:$0xf]
        %v880 = vld [vmem:[#allocation8 + $0x24] sm:$0xf]
        %v881 = vld [vmem:[#allocation8 + $0x28] sm:$0xf]
        %v882 = vld [vmem:[#allocation8 + $0x2c] sm:$0xf]
        %v883 = vld [vmem:[#allocation8 + $0x30] sm:$0xf]
        %v884 = vld [vmem:[#allocation8 + $0x34] sm:$0xf]
        %v885 = vld [vmem:[#allocation8 + $0x38] sm:$0xf]
        %v886 = vld [vmem:[#allocation8 + $0x3c] sm:$0xf]
        %v887 = vld [vmem:[#allocation8 + $0x40] sm:$0xf]
        %v888 = vld [vmem:[#allocation8 + $0x44] sm:$0xf]
        %v889 = vld [vmem:[#allocation8 + $0x48] sm:$0xf]
        %v890 = vld [vmem:[#allocation8 + $0x4c] sm:$0xf]
        %v891 = vld [vmem:[#allocation8 + $0x50] sm:$0xf]
        %v892 = vld [vmem:[#allocation8 + $0x54] sm:$0xf]
        %v893 = vld [vmem:[#allocation8 + $0x58] sm:$0xf]
        %v894 = vld [vmem:[#allocation8 + $0x5c] sm:$0xf]
        %v895 = vld [vmem:[#allocation8 + $0x60] sm:$0xf]
        %v896 = vld [vmem:[#allocation8 + $0x64] sm:$0xf]
        %v897 = vld [vmem:[#allocation8 + $0x68] sm:$0xf]
        %v898 = vld [vmem:[#allocation8 + $0x6c] sm:$0xf]
        %v899 = vld [vmem:[#allocation8 + $0x70] sm:$0xf]
        %v900 = vld [vmem:[#allocation8 + $0x74] sm:$0xf]
        %v901 = vld [vmem:[#allocation8 + $0x78] sm:$0xf]
        %v902 = vld [vmem:[#allocation8 + $0x7c] sm:$0xf]
        %v903 = vld [vmem:[#allocation8 + $0x80] sm:$0xf]
        %v904 = vld [vmem:[#allocation8 + $0x84] sm:$0xf]
        %v905 = vld [vmem:[#allocation8 + $0x88] sm:$0xf]
        %v906 = vld [vmem:[#allocation8 + $0x8c] sm:$0xf]
        %v907 = vld [vmem:[#allocation8 + $0x90] sm:$0xf]
        %v908 = vld [vmem:[#allocation8 + $0x94] sm:$0xf]
        %v909 = vld [vmem:[#allocation8 + $0x98] sm:$0xf]
        %v910 = vld [vmem:[#allocation8 + $0x9c] sm:$0xf]
        %v911 = vld [vmem:[#allocation8 + $0xa0] sm:$0xf]
        %v912 = vld [vmem:[#allocation8 + $0xa4] sm:$0xf]
        %v913 = vld [vmem:[#allocation8 + $0xa8] sm:$0xf]
        %v914 = vld [vmem:[#allocation8 + $0xac] sm:$0xf]
        %v915 = vld [vmem:[#allocation8 + $0xb0] sm:$0xf]
        %v916 = vld [vmem:[#allocation8 + $0xb4] sm:$0xf]
        %v917 = vld [vmem:[#allocation8 + $0xb8] sm:$0xf]
        %v918 = vld [vmem:[#allocation8 + $0xbc] sm:$0xf]
        %v919 = vld [vmem:[#allocation8 + $0xc0] sm:$0xf]
        %v920 = vld [vmem:[#allocation8 + $0xc4] sm:$0xf]
        %v921 = vld [vmem:[#allocation8 + $0xc8] sm:$0xf]
        %v922 = vld [vmem:[#allocation8 + $0xcc] sm:$0xf]
        %v923 = vld [vmem:[#allocation8 + $0xd0] sm:$0xf]
        %v924 = vld [vmem:[#allocation8 + $0xd4] sm:$0xf]
        %v925 = vld [vmem:[#allocation8 + $0xd8] sm:$0xf]
        %v926 = vld [vmem:[#allocation8 + $0xdc] sm:$0xf]
        %v927 = vld [vmem:[#allocation8 + $0xe0] sm:$0xf]
        %v928 = vld [vmem:[#allocation8 + $0xe4] sm:$0xf]
        %v929 = vld [vmem:[#allocation8 + $0xe8] sm:$0xf]
        %v930 = vld [vmem:[#allocation8 + $0xec] sm:$0xf]
        %v931 = vld [vmem:[#allocation8 + $0xf0] sm:$0xf]
        %v932 = vld [vmem:[#allocation8 + $0xf4] sm:$0xf]
        %v933 = vld [vmem:[#allocation8 + $0xf8] sm:$0xf]
        %v934 = vld [vmem:[#allocation8 + $0xfc] sm:$0xf]
        %v935 = vld [vmem:[#allocation9] sm:$0x1]
        %v937 = vlaneseq
        %v938 = vshrl.u32 %v937, 7
        %v939 = vsub.s32 0, %v938
        %v940 = vrot.slane %v935, %v939
        %v1006 = vunpack.c.l.b16 %v871
        %v1007 = vunpack.c.l.b16 %v872
        %v1008 = vunpack.c.l.b16 %v873
        %v1009 = vunpack.c.l.b16 %v874
        %v1010 = vunpack.c.l.b16 %v875
        %v1011 = vunpack.c.l.b16 %v876
        %v1012 = vunpack.c.l.b16 %v877
        %v1013 = vunpack.c.l.b16 %v878
        %v1014 = vunpack.c.l.b16 %v879
        %v1015 = vunpack.c.l.b16 %v880
        %v1016 = vunpack.c.l.b16 %v881
        %v1017 = vunpack.c.l.b16 %v882
        %v1018 = vunpack.c.l.b16 %v883
        %v1019 = vunpack.c.l.b16 %v884
        %v1020 = vunpack.c.l.b16 %v885
        %v1021 = vunpack.c.l.b16 %v886
        %v1022 = vunpack.c.l.b16 %v887
        %v1023 = vunpack.c.l.b16 %v888
        %v1024 = vunpack.c.l.b16 %v889
        %v1025 = vunpack.c.l.b16 %v890
        %v1026 = vunpack.c.l.b16 %v891
        %v1027 = vunpack.c.l.b16 %v892
        %v1028 = vunpack.c.l.b16 %v893
        %v1029 = vunpack.c.l.b16 %v894
        %v1030 = vunpack.c.l.b16 %v895
        %v1031 = vunpack.c.l.b16 %v896
        %v1032 = vunpack.c.l.b16 %v897
        %v1033 = vunpack.c.l.b16 %v898
        %v1034 = vunpack.c.l.b16 %v899
        %v1035 = vunpack.c.l.b16 %v900
        %v1036 = vunpack.c.l.b16 %v901
        %v1037 = vunpack.c.l.b16 %v902
        %v1038 = vunpack.c.l.b16 %v903
        %v1039 = vunpack.c.l.b16 %v904
        %v1040 = vunpack.c.l.b16 %v905
        %v1041 = vunpack.c.l.b16 %v906
        %v1042 = vunpack.c.l.b16 %v907
        %v1043 = vunpack.c.l.b16 %v908
        %v1044 = vunpack.c.l.b16 %v909
        %v1045 = vunpack.c.l.b16 %v910
        %v1046 = vunpack.c.l.b16 %v911
        %v1047 = vunpack.c.l.b16 %v912
        %v1048 = vunpack.c.l.b16 %v913
        %v1049 = vunpack.c.l.b16 %v914
        %v1050 = vunpack.c.l.b16 %v915
        %v1051 = vunpack.c.l.b16 %v916
        %v1052 = vunpack.c.l.b16 %v917
        %v1053 = vunpack.c.l.b16 %v918
        %v1054 = vunpack.c.l.b16 %v919
        %v1055 = vunpack.c.l.b16 %v920
        %v1056 = vunpack.c.l.b16 %v921
        %v1057 = vunpack.c.l.b16 %v922
        %v1058 = vunpack.c.l.b16 %v923
        %v1059 = vunpack.c.l.b16 %v924
        %v1060 = vunpack.c.l.b16 %v925
        %v1061 = vunpack.c.l.b16 %v926
        %v1062 = vunpack.c.l.b16 %v927
        %v1063 = vunpack.c.l.b16 %v928
        %v1064 = vunpack.c.l.b16 %v929
        %v1065 = vunpack.c.l.b16 %v930
        %v1066 = vunpack.c.l.b16 %v931
        %v1067 = vunpack.c.l.b16 %v932
        %v1068 = vunpack.c.l.b16 %v933
        %v1069 = vunpack.c.l.b16 %v934
        %v1070 = vpack.c.b16 %v1007, %v1006
        %v1071 = vpack.c.b16 %v1009, %v1008
        %v1072 = vpack.c.b16 %v1011, %v1010
        %v1073 = vpack.c.b16 %v1013, %v1012
        %v1074 = vpack.c.b16 %v1015, %v1014
        %v1075 = vpack.c.b16 %v1017, %v1016
        %v1076 = vpack.c.b16 %v1019, %v1018
        %v1077 = vpack.c.b16 %v1021, %v1020
        %v1078 = vpack.c.b16 %v1023, %v1022
        %v1079 = vpack.c.b16 %v1025, %v1024
        %v1080 = vpack.c.b16 %v1027, %v1026
        %v1081 = vpack.c.b16 %v1029, %v1028
        %v1082 = vpack.c.b16 %v1031, %v1030
        %v1083 = vpack.c.b16 %v1033, %v1032
        %v1084 = vpack.c.b16 %v1035, %v1034
        %v1085 = vpack.c.b16 %v1037, %v1036
        %v1086 = vpack.c.b16 %v1039, %v1038
        %v1087 = vpack.c.b16 %v1041, %v1040
        %v1088 = vpack.c.b16 %v1043, %v1042
        %v1089 = vpack.c.b16 %v1045, %v1044
        %v1090 = vpack.c.b16 %v1047, %v1046
        %v1091 = vpack.c.b16 %v1049, %v1048
        %v1092 = vpack.c.b16 %v1051, %v1050
        %v1093 = vpack.c.b16 %v1053, %v1052
        %v1094 = vpack.c.b16 %v1055, %v1054
        %v1095 = vpack.c.b16 %v1057, %v1056
        %v1096 = vpack.c.b16 %v1059, %v1058
        %v1097 = vpack.c.b16 %v1061, %v1060
        %v1098 = vpack.c.b16 %v1063, %v1062
        %v1099 = vpack.c.b16 %v1065, %v1064
        %v1100 = vpack.c.b16 %v1067, %v1066
        %v1101 = vpack.c.b16 %v1069, %v1068
        %1134 = vmatprep.subr.bf16.mxu0 0
        %1135 = vmatpush1.bf16.msra.mxu0 %v1070
        %1136 = vmatprep.subr.bf16.mxu0 0
        %1137 = vmatpush1.bf16.msra.mxu0 %v1071
        %1138 = vmatprep.subr.bf16.mxu0 0
        %1139 = vmatpush1.bf16.msra.mxu0 %v1072
        %1140 = vmatprep.subr.bf16.mxu0 0
        %1141 = vmatpush1.bf16.msra.mxu0 %v1073
        %1142 = vmatprep.subr.bf16.mxu0 0
        %1143 = vmatpush1.bf16.msra.mxu0 %v1074
        %1144 = vmatprep.subr.bf16.mxu0 0
        %1145 = vmatpush1.bf16.msra.mxu0 %v1075
        %1146 = vmatprep.subr.bf16.mxu0 0
        %1147 = vmatpush1.bf16.msra.mxu0 %v1076
        %1148 = vmatprep.subr.bf16.mxu0 0
        %1149 = vmatpush1.bf16.msra.mxu0 %v1077
        %1150 = vmatprep.subr.bf16.mxu0 0
        %1151 = vmatpush1.bf16.msra.mxu0 %v1078
        %1152 = vmatprep.subr.bf16.mxu0 0
        %1153 = vmatpush1.bf16.msra.mxu0 %v1079
        %1154 = vmatprep.subr.bf16.mxu0 0
        %1155 = vmatpush1.bf16.msra.mxu0 %v1080
        %1156 = vmatprep.subr.bf16.mxu0 0
        %1157 = vmatpush1.bf16.msra.mxu0 %v1081
        %1158 = vmatprep.subr.bf16.mxu0 0
        %1159 = vmatpush1.bf16.msra.mxu0 %v1082
        %1160 = vmatprep.subr.bf16.mxu0 0
        %1161 = vmatpush1.bf16.msra.mxu0 %v1083
        %1162 = vmatprep.subr.bf16.mxu0 0
        %1163 = vmatpush1.bf16.msra.mxu0 %v1084
        %1164 = vmatprep.subr.bf16.mxu0 0
        %1165 = vmatpush1.bf16.msra.mxu0 %v1085
        %1166 = vmatprep.mubr.bf16.mxu0 %v840
        %1167 = vmatmul.mubr.bf16.gmra.mrb[0].mxu0 %v839
        %v1168 = vpop.f32.mrb[0].mxu0
        %v1169 = vadd.f32 %v940, %v1168
        %v1170 = vpop.f32.mrb[0].mxu0
        %v1171 = vpop.f32.mrb[0].mxu0
        %v1172 = vadd.f32 %v940, %v1171
        %v1173 = vpop.f32.mrb[0].mxu0
        %1174 = vmatprep.mubr.bf16.mxu0 %v844
        %1175 = vmatmul.mubr.bf16.gmra.mrb[0].mxu0 %v843
        %v1176 = vpop.f32.mrb[0].mxu0
        %v1177 = vadd.f32 %v940, %v1176
        %v1178 = vpop.f32.mrb[0].mxu0
        %v1179 = vpop.f32.mrb[0].mxu0
        %v1180 = vadd.f32 %v940, %v1179
        %v1181 = vpop.f32.mrb[0].mxu0
        %1182 = vmatprep.mubr.bf16.mxu0 %v848
        %1183 = vmatmul.mubr.bf16.gmra.mrb[0].mxu0 %v847
        %v1184 = vpop.f32.mrb[0].mxu0
        %v1185 = vadd.f32 %v940, %v1184
        %v1186 = vpop.f32.mrb[0].mxu0
        %v1187 = vpop.f32.mrb[0].mxu0
        %v1188 = vadd.f32 %v940, %v1187
        %v1189 = vpop.f32.mrb[0].mxu0
        %1190 = vmatprep.mubr.bf16.mxu0 %v852
        %1191 = vmatmul.mubr.bf16.gmra.mrb[0].mxu0 %v851
        %v1192 = vpop.f32.mrb[0].mxu0
        %v1193 = vadd.f32 %v940, %v1192
        %v1194 = vpop.f32.mrb[0].mxu0
        %v1195 = vpop.f32.mrb[0].mxu0
        %v1196 = vadd.f32 %v940, %v1195
        %v1197 = vpop.f32.mrb[0].mxu0
        %1198 = vmatprep.mubr.bf16.mxu0 %v856
        %1199 = vmatmul.mubr.bf16.gmra.mrb[0].mxu0 %v855
        %v1200 = vpop.f32.mrb[0].mxu0
        %v1201 = vadd.f32 %v940, %v1200
        %v1202 = vpop.f32.mrb[0].mxu0
        %v1203 = vpop.f32.mrb[0].mxu0
        %v1204 = vadd.f32 %v940, %v1203
        %v1205 = vpop.f32.mrb[0].mxu0
        %1206 = vmatprep.mubr.bf16.mxu0 %v860
        %1207 = vmatmul.mubr.bf16.gmra.mrb[0].mxu0 %v859
        %v1208 = vpop.f32.mrb[0].mxu0
        %v1209 = vadd.f32 %v940, %v1208
        %v1210 = vpop.f32.mrb[0].mxu0
        %v1211 = vpop.f32.mrb[0].mxu0
        %v1212 = vadd.f32 %v940, %v1211
        %v1213 = vpop.f32.mrb[0].mxu0
        %1214 = vmatprep.mubr.bf16.mxu0 %v864
        %1215 = vmatmul.mubr.bf16.gmra.mrb[0].mxu0 %v863
        %v1216 = vpop.f32.mrb[0].mxu0
        %v1217 = vadd.f32 %v940, %v1216
        %v1218 = vpop.f32.mrb[0].mxu0
        %v1219 = vpop.f32.mrb[0].mxu0
        %v1220 = vadd.f32 %v940, %v1219
        %v1221 = vpop.f32.mrb[0].mxu0
        %1222 = vmatprep.mubr.bf16.mxu0 %v868
        %1223 = vmatmul.mubr.bf16.gmra.mrb[0].mxu0 %v867
        %v1224 = vpop.f32.mrb[0].mxu0
        %v1225 = vadd.f32 %v940, %v1224
        %v1226 = vpop.f32.mrb[0].mxu0
        %v1227 = vpop.f32.mrb[0].mxu0
        %v1228 = vadd.f32 %v940, %v1227
        %v1229 = vpop.f32.mrb[0].mxu0
        %1230 = vdwg.mxu0
        %1231 = vmatprep.subr.bf16.mxu0 0
        %1232 = vmatpush1.bf16.msra.mxu0 %v1086
        %1233 = vmatprep.subr.bf16.mxu0 0
        %1234 = vmatpush1.bf16.msra.mxu0 %v1087
        %1235 = vmatprep.subr.bf16.mxu0 0
        %1236 = vmatpush1.bf16.msra.mxu0 %v1088
        %1237 = vmatprep.subr.bf16.mxu0 0
        %1238 = vmatpush1.bf16.msra.mxu0 %v1089
        %1239 = vmatprep.subr.bf16.mxu0 0
        %1240 = vmatpush1.bf16.msra.mxu0 %v1090
        %1241 = vmatprep.subr.bf16.mxu0 0
        %1242 = vmatpush1.bf16.msra.mxu0 %v1091
        %1243 = vmatprep.subr.bf16.mxu0 0
        %1244 = vmatpush1.bf16.msra.mxu0 %v1092
        %1245 = vmatprep.subr.bf16.mxu0 0
        %1246 = vmatpush1.bf16.msra.mxu0 %v1093
        %1247 = vmatprep.subr.bf16.mxu0 0
        %1248 = vmatpush1.bf16.msra.mxu0 %v1094
        %1249 = vmatprep.subr.bf16.mxu0 0
        %1250 = vmatpush1.bf16.msra.mxu0 %v1095
        %1251 = vmatprep.subr.bf16.mxu0 0
        %1252 = vmatpush1.bf16.msra.mxu0 %v1096
        %1253 = vmatprep.subr.bf16.mxu0 0
        %1254 = vmatpush1.bf16.msra.mxu0 %v1097
        %1255 = vmatprep.subr.bf16.mxu0 0
        %1256 = vmatpush1.bf16.msra.mxu0 %v1098
        %1257 = vmatprep.subr.bf16.mxu0 0
        %1258 = vmatpush1.bf16.msra.mxu0 %v1099
        %1259 = vmatprep.subr.bf16.mxu0 0
        %1260 = vmatpush1.bf16.msra.mxu0 %v1100
        %1261 = vmatprep.subr.bf16.mxu0 0
        %1262 = vmatpush1.bf16.msra.mxu0 %v1101
        %1263 = vmatprep.mubr.bf16.mxu0 %v842
        %1264 = vmatmul.mubr.bf16.gmra.mrb[0].mxu0 %v841
        %v1265 = vpop.f32.mrb[0].mxu0
        %v1266 = vadd.f32 %v1169, %v1265
        %v1267 = vpop.f32.mrb[0].mxu0
        %v1268 = vpop.f32.mrb[0].mxu0
        %v1269 = vadd.f32 %v1172, %v1268
        %v1270 = vpop.f32.mrb[0].mxu0
        %1271 = vmatprep.mubr.bf16.mxu0 %v846
        %1272 = vmatmul.mubr.bf16.gmra.mrb[0].mxu0 %v845
        %v1273 = vpop.f32.mrb[0].mxu0
        %v1274 = vadd.f32 %v1177, %v1273
        %v1275 = vpop.f32.mrb[0].mxu0
        %v1276 = vpop.f32.mrb[0].mxu0
        %v1277 = vadd.f32 %v1180, %v1276
        %v1278 = vpop.f32.mrb[0].mxu0
        %1279 = vmatprep.mubr.bf16.mxu0 %v850
        %1280 = vmatmul.mubr.bf16.gmra.mrb[0].mxu0 %v849
        %v1281 = vpop.f32.mrb[0].mxu0
        %v1282 = vadd.f32 %v1185, %v1281
        %v1283 = vpop.f32.mrb[0].mxu0
        %v1284 = vpop.f32.mrb[0].mxu0
        %v1285 = vadd.f32 %v1188, %v1284
        %v1286 = vpop.f32.mrb[0].mxu0
        %1287 = vmatprep.mubr.bf16.mxu0 %v854
        %1288 = vmatmul.mubr.bf16.gmra.mrb[0].mxu0 %v853
        %v1289 = vpop.f32.mrb[0].mxu0
        %v1290 = vadd.f32 %v1193, %v1289
        %v1291 = vpop.f32.mrb[0].mxu0
        %v1292 = vpop.f32.mrb[0].mxu0
        %v1293 = vadd.f32 %v1196, %v1292
        %v1294 = vpop.f32.mrb[0].mxu0
        %1295 = vmatprep.mubr.bf16.mxu0 %v858
        %1296 = vmatmul.mubr.bf16.gmra.mrb[0].mxu0 %v857
        %v1297 = vpop.f32.mrb[0].mxu0
        %v1298 = vadd.f32 %v1201, %v1297
        %v1299 = vpop.f32.mrb[0].mxu0
        %v1300 = vpop.f32.mrb[0].mxu0
        %v1301 = vadd.f32 %v1204, %v1300
        %v1302 = vpop.f32.mrb[0].mxu0
        %1303 = vmatprep.mubr.bf16.mxu0 %v862
        %1304 = vmatmul.mubr.bf16.gmra.mrb[0].mxu0 %v861
        %v1305 = vpop.f32.mrb[0].mxu0
        %v1306 = vadd.f32 %v1209, %v1305
        %v1307 = vpop.f32.mrb[0].mxu0
        %v1308 = vpop.f32.mrb[0].mxu0
        %v1309 = vadd.f32 %v1212, %v1308
        %v1310 = vpop.f32.mrb[0].mxu0
        %1311 = vmatprep.mubr.bf16.mxu0 %v866
        %1312 = vmatmul.mubr.bf16.gmra.mrb[0].mxu0 %v865
        %v1313 = vpop.f32.mrb[0].mxu0
        %v1314 = vadd.f32 %v1217, %v1313
        %v1315 = vpop.f32.mrb[0].mxu0
        %v1316 = vpop.f32.mrb[0].mxu0
        %v1317 = vadd.f32 %v1220, %v1316
        %v1318 = vpop.f32.mrb[0].mxu0
        %1319 = vmatprep.mubr.bf16.mxu0 %v870
        %1320 = vmatmul.mubr.bf16.gmra.mrb[0].mxu0 %v869
        %v1321 = vpop.f32.mrb[0].mxu0
        %v1322 = vadd.f32 %v1225, %v1321
        %v1323 = vpop.f32.mrb[0].mxu0
        %v1324 = vpop.f32.mrb[0].mxu0
        %v1325 = vadd.f32 %v1228, %v1324
        %v1326 = vpop.f32.mrb[0].mxu0
        %1327 = vdwg.mxu0
        %1328 = vst [vmem:[%s282] sm:$0xff] %v1266
        %1329 = vst [vmem:[%s282 + $0x8] sm:$0xff] %v1269
        %1330 = vst [vmem:[%s282 + $0x10] sm:$0xff] %v1274
        %1331 = vst [vmem:[%s282 + $0x18] sm:$0xff] %v1277
        %1332 = vst [vmem:[%s282 + $0x20] sm:$0xff] %v1282
        %1333 = vst [vmem:[%s282 + $0x28] sm:$0xff] %v1285
        %1334 = vst [vmem:[%s282 + $0x30] sm:$0xff] %v1290
        %1335 = vst [vmem:[%s282 + $0x38] sm:$0xff] %v1293
        %1336 = vst [vmem:[%s282 + $0x40] sm:$0xff] %v1298
        %1337 = vst [vmem:[%s282 + $0x48] sm:$0xff] %v1301
        %1338 = vst [vmem:[%s282 + $0x50] sm:$0xff] %v1306
        %1339 = vst [vmem:[%s282 + $0x58] sm:$0xff] %v1309
        %1340 = vst [vmem:[%s282 + $0x60] sm:$0xff] %v1314
        %1341 = vst [vmem:[%s282 + $0x68] sm:$0xff] %v1317
        %1342 = vst [vmem:[%s282 + $0x70] sm:$0xff] %v1322
        %1343 = vst [vmem:[%s282 + $0x78] sm:$0xff] %v1325
        %s1344 = sand.u32 %s127, 1
        %s1345 = scalar_lea.sflag [#allocation5], %s1344
        %s1346 = sand.u32 %s127, 1
        %s1347 = smul.addr %s1346, 128
        %s1348 = scalar_lea.vmem [#allocation11], %s1347
        // Predicated region
        $region53: #{tpu_custom_call.1} parent=35 // pred_check
          %p1349 = pneg %p137
        $region54: #{tpu_custom_call.1} parent=35 // pred_check_branch
          %1351 = sbr.rel (%p1349) target = $region56
        $region55: #{tpu_custom_call.1} parent=35 // pred_region
          %s1353 = ssub.s32 2048, 2048
          %1354 = vsyncadd %s1345, %s1353
          %s1355 = smul.addr %s25, 16
          %s1356 = smul.addr %s1355, 128
          %s1357 = scalar_lea.hbm %s4, %s1356
          %s1358 = sshll.u32 %s1348, 4
          %s1359 = int_to_ptr.vmem [resolvable:$true] %s1358
          %1364 = dma.vmem_to_hbm [thread:$0]  %s1359, 2048, %s1357, %s1345, 128, 128, 8
        $region56: #{tpu_custom_call.1} parent=35 // pred_fallthru
          _
      $region36: #{tpu_custom_call.1} parent=5 // pred_fallthru
        _
      %p1365 = scmp.le.s32.totalorder 2, %s20
      // Predicated region
      $region57: #{tpu_custom_call.1} parent=5 // pred_check
        %p1366 = pneg %p1365
      $region58: #{tpu_custom_call.1} parent=5 // pred_check_branch
        %1368 = sbr.rel (%p1366) target = $region60
      $region59: #{tpu_custom_call.1} parent=5 // pred_region
        %s1369 = ssub.s32 %s20, 2
        // Predicated region
        $region61: #{tpu_custom_call.1} parent=59 // pred_check
          %p1370 = pneg %p143
        $region62: #{tpu_custom_call.1} parent=59 // pred_check_branch
          %1372 = sbr.rel (%p1370) target = $region64
        $region63: #{tpu_custom_call.1} parent=59 // pred_region
          %s1373 = sand.u32 %s128, 1
          %s1374 = scalar_lea.sflag [#allocation5], %s1373
          %s1375 = sand.u32 %s128, 1
          %s1376 = smul.addr %s1375, 128
          %s1377 = scalar_lea.vmem [#allocation11], %s1376
          %1378 = dma.done %s1374, 2048
        $region64: #{tpu_custom_call.1} parent=59 // pred_fallthru
          _
      $region60: #{tpu_custom_call.1} parent=5 // pred_fallthru
        _
    $region6: #{tpu_custom_call.1} parent=1 // loop_footer
      %s24 = sadd.s32 1, %s20
    $region7: #{tpu_custom_call.1} parent=1 // loop_footer_branch
      %19 = sbr.rel target = $region3
    $region8: #{tpu_custom_call.1} parent=1 // loop_exit
      _
    %1379 = vsyncpa [#allocation4], 1
    %s1380 = scalar_lea.sflag [#allocation4], 1
    %1381 = vsyncpa %s1380, 1
    %1382 = vsyncpa [#allocation7], 1
    %s1383 = scalar_lea.sflag [#allocation7], 1
    %1384 = vsyncpa %s1383, 1
    %1385 = vsyncpa [#allocation10], 1
    %1386 = vsyncpa [#allocation5], 1
    %s1387 = scalar_lea.sflag [#allocation5], 1
    %1388 = vsyncpa %s1387, 1

</llo_original>
